<compile_context>
chip_gen: v7x
topology: tpu7x:2x2x1
jax: 0.10.0
libtpu: 0.0.40
codegen_flags: <defaults>
</compile_context>

<pallas_src>
import math

import jax
import jax.numpy as jnp
from jax.experimental import pallas as pl
from jax.experimental.pallas import tpu as pltpu

# ---------------- model config (small, consistent with the module) ----------
B = 2            # batch
S = 8            # sequence length
BS = B * S
H = 32           # hidden size (bert.config.hidden_size)
NH = 2           # attention heads
DH = H // NH     # head dim
FF = 64          # intermediate size
L = 2            # encoder layers
VOCAB = 50
N_GOOD = 3
N_BAD = 2
N_OUT = N_GOOD + N_BAD
GOOD_KEY = "good_logits"
BAD_KEY = "bad_logits"
LN_EPS = 1e-12
ATTN_SCALE = 1.0 / math.sqrt(DH)
LANES = 128

# ---- packed bf16 matmul-weight slab: row layout (all cols start at 0) ------
WQKV_R, WO_R, W1_R, W2_R = 0, 32, 64, 96       # offsets within a layer block
LAYER_WROWS = 160                              # 32+32+32+64
POOLER_W_R = L * LAYER_WROWS                   # 320
HEAD_W_R = POOLER_W_R + H                      # 352
WM_ROWS = HEAD_W_R + H                         # 384

# ---- packed f32 vector-param slab: row layout -------------------------------
EMB_G_R, EMB_B_R = 0, 1
LAYER_VBASE = 2
LAYER_VROWS = 8        # bqkv, bo, ln1_g, ln1_b, b1, b2, ln2_g, ln2_b
POOLER_B_R = LAYER_VBASE + L * LAYER_VROWS     # 18
VP_ROWS = POOLER_B_R + 1                       # 19

# ---- packed f32 embedding table: word | type | pos (pre-tiled over batch) ---
TYPE_R = VOCAB
POS_R = VOCAB + 2
TAB_ROWS = VOCAB + 2 + BS                      # 68


# ---------------- fused Pallas kernel ---------------------------------------
def _layernorm(x, g, b):
    mu = jnp.mean(x, axis=-1, keepdims=True)
    var = jnp.mean(jnp.square(x - mu), axis=-1, keepdims=True)
    return (x - mu) * jax.lax.rsqrt(var + LN_EPS) * g + b


def _mm(a_f32, w_bf16):
    """Weight matmul: bf16 x bf16 on the MXU, f32 accumulate."""
    return jnp.dot(a_f32.astype(jnp.bfloat16), w_bf16,
                   preferred_element_type=jnp.float32)


def _fused_bert_kernel(ids_ref, tab_ref, wm_ref, vp_ref, out_ref):
    f32 = jnp.float32

    # ---- embeddings: one-hot word lookup (MXU), type select, pre-tiled pos --
    ids = ids_ref[...]                                     # [BS, 2] int32
    word_id = ids[:, 0:1]
    type_id = ids[:, 1:2]
    vocab_iota = jax.lax.broadcasted_iota(jnp.int32, (BS, VOCAB), 1)
    word_oh = jnp.where(word_id == vocab_iota, 1.0, 0.0).astype(f32)
    word_e = jnp.dot(word_oh, tab_ref[0:VOCAB, :],
                     preferred_element_type=f32)           # [BS, H]
    type_e = jnp.where(type_id == 0,
                       tab_ref[TYPE_R:TYPE_R + 1, :],
                       tab_ref[TYPE_R + 1:TYPE_R + 2, :])  # [BS, H]
    pos_e = tab_ref[POS_R:POS_R + BS, :]                   # [BS, H]
    x = _layernorm(word_e + type_e + pos_e,
                   vp_ref[EMB_G_R:EMB_G_R + 1, 0:H],
                   vp_ref[EMB_B_R:EMB_B_R + 1, 0:H])

    # ---- block-diagonal (per-batch) attention mask, built once --------------
    ri = jax.lax.broadcasted_iota(jnp.int32, (BS, BS), 0)
    ci = jax.lax.broadcasted_iota(jnp.int32, (BS, BS), 1)
    same = None
    for b in range(B):           # B is tiny & static: compares/ands only
        rb = (ri >= b * S) & (ri < (b + 1) * S)
        cb = (ci >= b * S) & (ci < (b + 1) * S)
        m = rb & cb
        same = m if same is None else (same | m)
    mask_bias = jnp.where(same, 0.0, -1e30).astype(f32)    # [BS, BS]

    # ---- encoder layers (static unroll, weights sliced from packed slab) ----
    for l in range(L):
        wb = l * LAYER_WROWS
        vb = LAYER_VBASE + l * LAYER_VROWS

        # fused QKV projection: one MXU matmul, 96 output lanes
        qkv = (_mm(x, wm_ref[wb + WQKV_R:wb + WQKV_R + H, 0:3 * H])
               + vp_ref[vb:vb + 1, 0:3 * H])               # [BS, 3H]

        # per-head attention over ALL rows with batch-block-diagonal masking;
        # output projection accumulated per head (no concatenates).
        attn = None
        for hh in range(NH):
            c = hh * DH
            qh = qkv[:, c:c + DH]                          # [BS, DH]
            kh = qkv[:, H + c:H + c + DH]                  # [BS, DH]
            vh = qkv[:, 2 * H + c:2 * H + c + DH]          # [BS, DH]
            s = jax.lax.dot_general(
                qh, kh, (((1,), (1,)), ((), ())),
                preferred_element_type=f32) * ATTN_SCALE   # [BS, BS]
            s = s + mask_bias
            s = s - jnp.max(s, axis=-1, keepdims=True)
            p = jnp.exp(s)
            p = p * pl.reciprocal(jnp.sum(p, axis=-1, keepdims=True),
                                  approx=True)
            ctx_h = jnp.dot(p, vh, preferred_element_type=f32)   # [BS, DH]
            wo_h = wm_ref[wb + WO_R + c:wb + WO_R + c + DH, 0:H]  # [DH, H]
            part = _mm(ctx_h, wo_h)                        # [BS, H]
            attn = part if attn is None else attn + part
        attn = attn + vp_ref[vb + 1:vb + 2, 0:H]

        h1 = _layernorm(x + attn,
                        vp_ref[vb + 2:vb + 3, 0:H], vp_ref[vb + 3:vb + 4, 0:H])

        ff = (_mm(h1, wm_ref[wb + W1_R:wb + W1_R + H, 0:FF])
              + vp_ref[vb + 4:vb + 5, 0:FF])
        ff = jax.nn.gelu(ff, approximate=True)
        ff = (_mm(ff, wm_ref[wb + W2_R:wb + W2_R + FF, 0:H])
              + vp_ref[vb + 5:vb + 6, 0:H])
        x = _layernorm(h1 + ff,
                       vp_ref[vb + 6:vb + 7, 0:H], vp_ref[vb + 7:vb + 8, 0:H])

    # ---- pooler + bias-free head on ALL rows (CLS rows picked in glue) ------
    pooled_all = jnp.tanh(
        _mm(x, wm_ref[POOLER_W_R:POOLER_W_R + H, 0:H])
        + vp_ref[POOLER_B_R:POOLER_B_R + 1, 0:H])          # [BS, H]
    logits_all = _mm(pooled_all, wm_ref[HEAD_W_R:HEAD_W_R + H, :])  # [BS, 128]

    # ---- single packed, lane-dense output slab -------------------------------
    out_ref[0:BS, 0:H] = x                                 # last_hidden_state
    out_ref[BS:2 * BS, 0:H] = pooled_all                   # pooler (all rows)
    out_ref[2 * BS:3 * BS, :] = logits_all                 # head (all rows)


_VMEM_SPEC = pl.BlockSpec(memory_space=pltpu.MemorySpace.VMEM)

_COST = pl.CostEstimate(
    flops=804_864,             # emb one-hot + 2 layers + pooler + head
    transcendentals=3_700,     # exp / tanh-gelu / tanh / rsqrt / recip
    bytes_accessed=141_440,    # 4 packed inputs + 1 packed output
)


def fused_bert_call(ids, params):
    """One pallas_call for embeddings + trunk + pooler + head."""
    return pl.pallas_call(
        _fused_bert_kernel,
        out_shape=jax.ShapeDtypeStruct((3 * BS, LANES), jnp.float32),
        in_specs=[_VMEM_SPEC] * 4,
        out_specs=_VMEM_SPEC,
        cost_estimate=_COST,
    )(ids, params["emb_tab"], params["wmat"], params["vparams"])


# ---------------- parameter init (deterministic, pre-packed) ----------------
def init_params(key):
    ks = iter(jax.random.split(key, 64))

    def w(shape, scale=0.02):
        return (scale * jax.random.normal(next(ks), shape)).astype(jnp.float32)

    word_emb = w((VOCAB, H))
    pos_emb = w((S, H))
    type_emb = w((2, H))
    wqkv = [w((H, 3 * H)) for _ in range(L)]
    wo = [w((H, H)) for _ in range(L)]
    w1 = [w((H, FF)) for _ in range(L)]
    w2 = [w((FF, H)) for _ in range(L)]
    pooler_w = w((H, H))
    head_w = w((H, N_OUT))     # nn.Linear(hidden, n_good + n_bad, bias=False)

    # embedding table: word | type | positions pre-tiled over the batch
    emb_tab = jnp.concatenate(
        [word_emb, type_emb, jnp.tile(pos_emb, (B, 1))], axis=0)   # [68, 32]

    # one bf16 slab for every matmul weight (head zero-padded to 128 lanes)
    wm = jnp.zeros((WM_ROWS, LANES), jnp.float32)
    for l in range(L):
        b0 = l * LAYER_WROWS
        wm = wm.at[b0 + WQKV_R:b0 + WQKV_R + H, 0:3 * H].set(wqkv[l])
        wm = wm.at[b0 + WO_R:b0 + WO_R + H, 0:H].set(wo[l])
        wm = wm.at[b0 + W1_R:b0 + W1_R + H, 0:FF].set(w1[l])
        wm = wm.at[b0 + W2_R:b0 + W2_R + FF, 0:H].set(w2[l])
    wm = wm.at[POOLER_W_R:POOLER_W_R + H, 0:H].set(pooler_w)
    wm = wm.at[HEAD_W_R:HEAD_W_R + H, 0:N_OUT].set(head_w)

    # one f32 slab for LN gammas/betas and biases (betas/biases stay zero)
    vp = jnp.zeros((VP_ROWS, LANES), jnp.float32)
    vp = vp.at[EMB_G_R, 0:H].set(1.0)
    for l in range(L):
        vb = LAYER_VBASE + l * LAYER_VROWS
        vp = vp.at[vb + 2, 0:H].set(1.0)   # ln1 gamma
        vp = vp.at[vb + 6, 0:H].set(1.0)   # ln2 gamma

    return {
        "emb_tab": emb_tab,                       # f32 [68, 32]
        "wmat": wm.astype(jnp.bfloat16),          # bf16 [384, 128]
        "vparams": vp,                            # f32 [19, 128]
    }


# ---------------- forward ----------------------------------------------------
@jax.jit
def good_bad_bert_forward(params, input_ids, token_type_ids):
    """Equivalent of GoodBadBERT.forward(input_ids=..., token_type_ids=...)."""
    Bb, Ss = input_ids.shape
    ids = jnp.stack([input_ids.reshape(-1).astype(jnp.int32),
                     token_type_ids.reshape(-1).astype(jnp.int32)], axis=-1)
    slab = fused_bert_call(ids, params)

    last = slab[0:Bb * Ss, 0:H].reshape(Bb, Ss, H)
    pooled = slab[Bb * Ss:2 * Bb * Ss, 0:H].reshape(Bb, Ss, H)[:, 0, :]
    logits = slab[2 * Bb * Ss:3 * Bb * Ss, 0:N_OUT].reshape(Bb, Ss, N_OUT)[:, 0, :]

    return {
        GOOD_KEY: logits[:, :N_GOOD],
        BAD_KEY: logits[:, N_GOOD:],
        "reps": pooled,                            # pooler_output
        "last_hidden_state": last,
    }


if __name__ == "__main__":
    key = jax.random.PRNGKey(0)
    pkey, dkey = jax.random.split(key)
    params = init_params(pkey)

    input_ids = jax.random.randint(dkey, (B, S), 0, VOCAB, dtype=jnp.int32)
    token_type_ids = jnp.zeros((B, S), jnp.int32)

    out = good_bad_bert_forward(params, input_ids, token_type_ids)
    jax.block_until_ready(out)

    assert out[GOOD_KEY].shape == (B, N_GOOD)
    assert out[BAD_KEY].shape == (B, N_BAD)
    assert out["reps"].shape == (B, H)
    assert out["last_hidden_state"].shape == (B, S, H)
    assert jnp.all(jnp.isfinite(out[GOOD_KEY]))
    assert jnp.all(jnp.isfinite(out[BAD_KEY]))
    print("KERNEL_OK")
</pallas_src>

<mosaic_0001>
module attributes {stable_mosaic.version = 11 : i64} {
  func.func @_fused_bert_kernel(%arg0: memref<16x2xi32, #tpu.memory_space<vmem>>, %arg1: memref<68x32xf32, #tpu.memory_space<vmem>>, %arg2: memref<384x128xbf16, #tpu.memory_space<vmem>>, %arg3: memref<19x128xf32, #tpu.memory_space<vmem>>, %arg4: memref<48x128xf32, #tpu.memory_space<vmem>>) attributes {dimension_semantics = [], scalar_prefetch = 0 : i64, scratch_operands = 0 : i64, tpu.core_type = #tpu.core_type<tc>} {
    %c0 = arith.constant 0 : index
    %c0_0 = arith.constant 0 : index
    %0 = vector.load %arg0[%c0, %c0_0] : memref<16x2xi32, #tpu.memory_space<vmem>>, vector<16x2xi32>
    %1 = vector.extract_strided_slice %0 {offsets = [0, 0], sizes = [16, 1], strides = [1, 1]} : vector<16x2xi32> to vector<16x1xi32>
    %2 = vector.extract_strided_slice %0 {offsets = [0, 1], sizes = [16, 1], strides = [1, 1]} : vector<16x2xi32> to vector<16x1xi32>
    %3 = tpu.iota {dimensions = array<i32: 1>} : vector<16x50xi32>
    %4 = vector.broadcast %1 : vector<16x1xi32> to vector<16x50xi32>
    %5 = arith.cmpi eq, %4, %3 : vector<16x50xi32>
    %cst = arith.constant 1.000000e+00 : f32
    %cst_1 = arith.constant 0.000000e+00 : f32
    %6 = vector.broadcast %cst : f32 to vector<16x50xf32>
    %7 = vector.broadcast %cst_1 : f32 to vector<16x50xf32>
    %8 = arith.select %5, %6, %7 : vector<16x50xi1>, vector<16x50xf32>
    %c0_2 = arith.constant 0 : index
    %c0_3 = arith.constant 0 : index
    %9 = vector.load %arg1[%c0_2, %c0_3] : memref<68x32xf32, #tpu.memory_space<vmem>>, vector<50x32xf32>
    %cst_4 = arith.constant dense<0.000000e+00> : vector<16x32xf32>
    %10 = tpu.matmul %8, %9, %cst_4 {dimension_numbers = #tpu.dot_dimension_numbers<[1], [0], [0], [1], [0, 0, 1, 1], [], []>} : vector<16x50xf32>, vector<50x32xf32>, vector<16x32xf32> -> vector<16x32xf32>
    %c0_i32 = arith.constant 0 : i32
    %11 = vector.broadcast %c0_i32 : i32 to vector<16x1xi32>
    %12 = arith.cmpi eq, %2, %11 : vector<16x1xi32>
    %c50 = arith.constant 50 : index
    %c0_5 = arith.constant 0 : index
    %13 = vector.load %arg1[%c50, %c0_5] : memref<68x32xf32, #tpu.memory_space<vmem>>, vector<1x32xf32>
    %c51 = arith.constant 51 : index
    %c0_6 = arith.constant 0 : index
    %14 = vector.load %arg1[%c51, %c0_6] : memref<68x32xf32, #tpu.memory_space<vmem>>, vector<1x32xf32>
    %15 = vector.shape_cast %12 : vector<16x1xi1> to vector<16x1xi1>
    %16 = vector.broadcast %15 : vector<16x1xi1> to vector<16x32xi1>
    %17 = vector.shape_cast %13 : vector<1x32xf32> to vector<1x32xf32>
    %18 = vector.broadcast %17 : vector<1x32xf32> to vector<16x32xf32>
    %19 = vector.shape_cast %14 : vector<1x32xf32> to vector<1x32xf32>
    %20 = vector.broadcast %19 : vector<1x32xf32> to vector<16x32xf32>
    %21 = arith.select %16, %18, %20 : vector<16x32xi1>, vector<16x32xf32>
    %c52 = arith.constant 52 : index
    %c0_7 = arith.constant 0 : index
    %22 = vector.load %arg1[%c52, %c0_7] : memref<68x32xf32, #tpu.memory_space<vmem>>, vector<16x32xf32>
    %23 = arith.addf %10, %21 : vector<16x32xf32>
    %24 = arith.addf %23, %22 : vector<16x32xf32>
    %c0_8 = arith.constant 0 : index
    %c0_9 = arith.constant 0 : index
    %25 = vector.load %arg3[%c0_8, %c0_9] : memref<19x128xf32, #tpu.memory_space<vmem>>, vector<1x32xf32>
    %c1 = arith.constant 1 : index
    %c0_10 = arith.constant 0 : index
    %26 = vector.load %arg3[%c1, %c0_10] : memref<19x128xf32, #tpu.memory_space<vmem>>, vector<1x32xf32>
    %cst_11 = arith.constant dense<0.000000e+00> : vector<16xf32>
    %27 = vector.multi_reduction <add>, %24, %cst_11 [1] : vector<16x32xf32> to vector<16xf32>
    %28 = vector.shape_cast %27 : vector<16xf32> to vector<16x1xf32>
    %cst_12 = arith.constant 3.200000e+01 : f32
    %29 = vector.broadcast %cst_12 : f32 to vector<16x1xf32>
    %30 = arith.divf %28, %29 : vector<16x1xf32>
    %31 = vector.broadcast %30 : vector<16x1xf32> to vector<16x32xf32>
    %32 = arith.subf %24, %31 : vector<16x32xf32>
    %33 = arith.mulf %32, %32 : vector<16x32xf32>
    %cst_13 = arith.constant dense<0.000000e+00> : vector<16xf32>
    %34 = vector.multi_reduction <add>, %33, %cst_13 [1] : vector<16x32xf32> to vector<16xf32>
    %35 = vector.shape_cast %34 : vector<16xf32> to vector<16x1xf32>
    %cst_14 = arith.constant 3.200000e+01 : f32
    %36 = vector.broadcast %cst_14 : f32 to vector<16x1xf32>
    %37 = arith.divf %35, %36 : vector<16x1xf32>
    %38 = vector.broadcast %30 : vector<16x1xf32> to vector<16x32xf32>
    %39 = arith.subf %24, %38 : vector<16x32xf32>
    %cst_15 = arith.constant 9.99999996E-13 : f32
    %40 = vector.broadcast %cst_15 : f32 to vector<16x1xf32>
    %41 = arith.addf %37, %40 : vector<16x1xf32>
    %42 = math.rsqrt %41 : vector<16x1xf32>
    %43 = vector.broadcast %42 : vector<16x1xf32> to vector<16x32xf32>
    %44 = arith.mulf %39, %43 : vector<16x32xf32>
    %45 = vector.broadcast %25 : vector<1x32xf32> to vector<16x32xf32>
    %46 = arith.mulf %44, %45 : vector<16x32xf32>
    %47 = vector.broadcast %26 : vector<1x32xf32> to vector<16x32xf32>
    %48 = arith.addf %46, %47 : vector<16x32xf32>
    %49 = tpu.iota {dimensions = array<i32: 0>} : vector<16x16xi32>
    %50 = tpu.iota {dimensions = array<i32: 1>} : vector<16x16xi32>
    %c0_i32_16 = arith.constant 0 : i32
    %51 = vector.broadcast %c0_i32_16 : i32 to vector<16x16xi32>
    %52 = arith.cmpi sge, %49, %51 : vector<16x16xi32>
    %c8_i32 = arith.constant 8 : i32
    %53 = vector.broadcast %c8_i32 : i32 to vector<16x16xi32>
    %54 = arith.cmpi slt, %49, %53 : vector<16x16xi32>
    %55 = arith.andi %52, %54 : vector<16x16xi1>
    %c0_i32_17 = arith.constant 0 : i32
    %56 = vector.broadcast %c0_i32_17 : i32 to vector<16x16xi32>
    %57 = arith.cmpi sge, %50, %56 : vector<16x16xi32>
    %c8_i32_18 = arith.constant 8 : i32
    %58 = vector.broadcast %c8_i32_18 : i32 to vector<16x16xi32>
    %59 = arith.cmpi slt, %50, %58 : vector<16x16xi32>
    %60 = arith.andi %57, %59 : vector<16x16xi1>
    %61 = arith.andi %55, %60 : vector<16x16xi1>
    %c8_i32_19 = arith.constant 8 : i32
    %62 = vector.broadcast %c8_i32_19 : i32 to vector<16x16xi32>
    %63 = arith.cmpi sge, %49, %62 : vector<16x16xi32>
    %c16_i32 = arith.constant 16 : i32
    %64 = vector.broadcast %c16_i32 : i32 to vector<16x16xi32>
    %65 = arith.cmpi slt, %49, %64 : vector<16x16xi32>
    %66 = arith.andi %63, %65 : vector<16x16xi1>
    %c8_i32_20 = arith.constant 8 : i32
    %67 = vector.broadcast %c8_i32_20 : i32 to vector<16x16xi32>
    %68 = arith.cmpi sge, %50, %67 : vector<16x16xi32>
    %c16_i32_21 = arith.constant 16 : i32
    %69 = vector.broadcast %c16_i32_21 : i32 to vector<16x16xi32>
    %70 = arith.cmpi slt, %50, %69 : vector<16x16xi32>
    %71 = arith.andi %68, %70 : vector<16x16xi1>
    %72 = arith.andi %66, %71 : vector<16x16xi1>
    %73 = arith.ori %61, %72 : vector<16x16xi1>
    %cst_22 = arith.constant 0.000000e+00 : f32
    %cst_23 = arith.constant -1.000000e+30 : f32
    %74 = vector.broadcast %cst_22 : f32 to vector<16x16xf32>
    %75 = vector.broadcast %cst_23 : f32 to vector<16x16xf32>
    %76 = arith.select %73, %74, %75 : vector<16x16xi1>, vector<16x16xf32>
    %c0_24 = arith.constant 0 : index
    %c0_25 = arith.constant 0 : index
    %77 = vector.load %arg2[%c0_24, %c0_25] : memref<384x128xbf16, #tpu.memory_space<vmem>>, vector<32x96xbf16>
    %78 = arith.truncf %48 : vector<16x32xf32> to vector<16x32xbf16>
    %cst_26 = arith.constant dense<0.000000e+00> : vector<16x96xf32>
    %79 = tpu.matmul %78, %77, %cst_26 {dimension_numbers = #tpu.dot_dimension_numbers<[1], [0], [0], [1], [0, 0, 1, 1], [], []>} : vector<16x32xbf16>, vector<32x96xbf16>, vector<16x96xf32> -> vector<16x96xf32>
    %c2 = arith.constant 2 : index
    %c0_27 = arith.constant 0 : index
    %80 = vector.load %arg3[%c2, %c0_27] : memref<19x128xf32, #tpu.memory_space<vmem>>, vector<1x96xf32>
    %81 = vector.broadcast %80 : vector<1x96xf32> to vector<16x96xf32>
    %82 = arith.addf %79, %81 : vector<16x96xf32>
    %83 = vector.extract_strided_slice %82 {offsets = [0, 0], sizes = [16, 16], strides = [1, 1]} : vector<16x96xf32> to vector<16x16xf32>
    %84 = vector.extract_strided_slice %82 {offsets = [0, 32], sizes = [16, 16], strides = [1, 1]} : vector<16x96xf32> to vector<16x16xf32>
    %85 = vector.extract_strided_slice %82 {offsets = [0, 64], sizes = [16, 16], strides = [1, 1]} : vector<16x96xf32> to vector<16x16xf32>
    %cst_28 = arith.constant dense<0.000000e+00> : vector<16x16xf32>
    %86 = tpu.matmul %83, %84, %cst_28 {dimension_numbers = #tpu.dot_dimension_numbers<[1], [1], [0], [0], [0, 0, 1, 0], [], []>} : vector<16x16xf32>, vector<16x16xf32>, vector<16x16xf32> -> vector<16x16xf32>
    %cst_29 = arith.constant 2.500000e-01 : f32
    %87 = vector.broadcast %cst_29 : f32 to vector<16x16xf32>
    %88 = arith.mulf %86, %87 : vector<16x16xf32>
    %89 = arith.addf %88, %76 : vector<16x16xf32>
    %cst_30 = arith.constant dense<0xFF800000> : vector<16xf32>
    %90 = vector.multi_reduction <maximumf>, %89, %cst_30 [1] : vector<16x16xf32> to vector<16xf32>
    %91 = vector.shape_cast %90 : vector<16xf32> to vector<16x1xf32>
    %92 = vector.broadcast %91 : vector<16x1xf32> to vector<16x16xf32>
    %93 = arith.subf %89, %92 : vector<16x16xf32>
    %94 = math.exp %93 : vector<16x16xf32>
    %cst_31 = arith.constant dense<0.000000e+00> : vector<16xf32>
    %95 = vector.multi_reduction <add>, %94, %cst_31 [1] : vector<16x16xf32> to vector<16xf32>
    %96 = vector.shape_cast %95 : vector<16xf32> to vector<16x1xf32>
    %97 = tpu.reciprocal %96 {approx = true} : vector<16x1xf32> -> vector<16x1xf32>
    %98 = vector.broadcast %97 : vector<16x1xf32> to vector<16x16xf32>
    %99 = arith.mulf %94, %98 : vector<16x16xf32>
    %cst_32 = arith.constant dense<0.000000e+00> : vector<16x16xf32>
    %100 = tpu.matmul %99, %85, %cst_32 {dimension_numbers = #tpu.dot_dimension_numbers<[1], [0], [0], [1], [0, 0, 1, 1], [], []>} : vector<16x16xf32>, vector<16x16xf32>, vector<16x16xf32> -> vector<16x16xf32>
    %c32 = arith.constant 32 : index
    %c0_33 = arith.constant 0 : index
    %101 = vector.load %arg2[%c32, %c0_33] : memref<384x128xbf16, #tpu.memory_space<vmem>>, vector<16x32xbf16>
    %102 = arith.truncf %100 : vector<16x16xf32> to vector<16x16xbf16>
    %cst_34 = arith.constant dense<0.000000e+00> : vector<16x32xf32>
    %103 = tpu.matmul %102, %101, %cst_34 {dimension_numbers = #tpu.dot_dimension_numbers<[1], [0], [0], [1], [0, 0, 1, 1], [], []>} : vector<16x16xbf16>, vector<16x32xbf16>, vector<16x32xf32> -> vector<16x32xf32>
    %104 = vector.extract_strided_slice %82 {offsets = [0, 16], sizes = [16, 16], strides = [1, 1]} : vector<16x96xf32> to vector<16x16xf32>
    %105 = vector.extract_strided_slice %82 {offsets = [0, 48], sizes = [16, 16], strides = [1, 1]} : vector<16x96xf32> to vector<16x16xf32>
    %106 = vector.extract_strided_slice %82 {offsets = [0, 80], sizes = [16, 16], strides = [1, 1]} : vector<16x96xf32> to vector<16x16xf32>
    %cst_35 = arith.constant dense<0.000000e+00> : vector<16x16xf32>
    %107 = tpu.matmul %104, %105, %cst_35 {dimension_numbers = #tpu.dot_dimension_numbers<[1], [1], [0], [0], [0, 0, 1, 0], [], []>} : vector<16x16xf32>, vector<16x16xf32>, vector<16x16xf32> -> vector<16x16xf32>
    %cst_36 = arith.constant 2.500000e-01 : f32
    %108 = vector.broadcast %cst_36 : f32 to vector<16x16xf32>
    %109 = arith.mulf %107, %108 : vector<16x16xf32>
    %110 = arith.addf %109, %76 : vector<16x16xf32>
    %cst_37 = arith.constant dense<0xFF800000> : vector<16xf32>
    %111 = vector.multi_reduction <maximumf>, %110, %cst_37 [1] : vector<16x16xf32> to vector<16xf32>
    %112 = vector.shape_cast %111 : vector<16xf32> to vector<16x1xf32>
    %113 = vector.broadcast %112 : vector<16x1xf32> to vector<16x16xf32>
    %114 = arith.subf %110, %113 : vector<16x16xf32>
    %115 = math.exp %114 : vector<16x16xf32>
    %cst_38 = arith.constant dense<0.000000e+00> : vector<16xf32>
    %116 = vector.multi_reduction <add>, %115, %cst_38 [1] : vector<16x16xf32> to vector<16xf32>
    %117 = vector.shape_cast %116 : vector<16xf32> to vector<16x1xf32>
    %118 = tpu.reciprocal %117 {approx = true} : vector<16x1xf32> -> vector<16x1xf32>
    %119 = vector.broadcast %118 : vector<16x1xf32> to vector<16x16xf32>
    %120 = arith.mulf %115, %119 : vector<16x16xf32>
    %cst_39 = arith.constant dense<0.000000e+00> : vector<16x16xf32>
    %121 = tpu.matmul %120, %106, %cst_39 {dimension_numbers = #tpu.dot_dimension_numbers<[1], [0], [0], [1], [0, 0, 1, 1], [], []>} : vector<16x16xf32>, vector<16x16xf32>, vector<16x16xf32> -> vector<16x16xf32>
    %c48 = arith.constant 48 : index
    %c0_40 = arith.constant 0 : index
    %122 = vector.load %arg2[%c48, %c0_40] : memref<384x128xbf16, #tpu.memory_space<vmem>>, vector<16x32xbf16>
    %123 = arith.truncf %121 : vector<16x16xf32> to vector<16x16xbf16>
    %cst_41 = arith.constant dense<0.000000e+00> : vector<16x32xf32>
    %124 = tpu.matmul %123, %122, %cst_41 {dimension_numbers = #tpu.dot_dimension_numbers<[1], [0], [0], [1], [0, 0, 1, 1], [], []>} : vector<16x16xbf16>, vector<16x32xbf16>, vector<16x32xf32> -> vector<16x32xf32>
    %125 = arith.addf %103, %124 : vector<16x32xf32>
    %c3 = arith.constant 3 : index
    %c0_42 = arith.constant 0 : index
    %126 = vector.load %arg3[%c3, %c0_42] : memref<19x128xf32, #tpu.memory_space<vmem>>, vector<1x32xf32>
    %127 = vector.broadcast %126 : vector<1x32xf32> to vector<16x32xf32>
    %128 = arith.addf %125, %127 : vector<16x32xf32>
    %129 = arith.addf %48, %128 : vector<16x32xf32>
    %c4 = arith.constant 4 : index
    %c0_43 = arith.constant 0 : index
    %130 = vector.load %arg3[%c4, %c0_43] : memref<19x128xf32, #tpu.memory_space<vmem>>, vector<1x32xf32>
    %c5 = arith.constant 5 : index
    %c0_44 = arith.constant 0 : index
    %131 = vector.load %arg3[%c5, %c0_44] : memref<19x128xf32, #tpu.memory_space<vmem>>, vector<1x32xf32>
    %cst_45 = arith.constant dense<0.000000e+00> : vector<16xf32>
    %132 = vector.multi_reduction <add>, %129, %cst_45 [1] : vector<16x32xf32> to vector<16xf32>
    %133 = vector.shape_cast %132 : vector<16xf32> to vector<16x1xf32>
    %cst_46 = arith.constant 3.200000e+01 : f32
    %134 = vector.broadcast %cst_46 : f32 to vector<16x1xf32>
    %135 = arith.divf %133, %134 : vector<16x1xf32>
    %136 = vector.broadcast %135 : vector<16x1xf32> to vector<16x32xf32>
    %137 = arith.subf %129, %136 : vector<16x32xf32>
    %138 = arith.mulf %137, %137 : vector<16x32xf32>
    %cst_47 = arith.constant dense<0.000000e+00> : vector<16xf32>
    %139 = vector.multi_reduction <add>, %138, %cst_47 [1] : vector<16x32xf32> to vector<16xf32>
    %140 = vector.shape_cast %139 : vector<16xf32> to vector<16x1xf32>
    %cst_48 = arith.constant 3.200000e+01 : f32
    %141 = vector.broadcast %cst_48 : f32 to vector<16x1xf32>
    %142 = arith.divf %140, %141 : vector<16x1xf32>
    %143 = vector.broadcast %135 : vector<16x1xf32> to vector<16x32xf32>
    %144 = arith.subf %129, %143 : vector<16x32xf32>
    %cst_49 = arith.constant 9.99999996E-13 : f32
    %145 = vector.broadcast %cst_49 : f32 to vector<16x1xf32>
    %146 = arith.addf %142, %145 : vector<16x1xf32>
    %147 = math.rsqrt %146 : vector<16x1xf32>
    %148 = vector.broadcast %147 : vector<16x1xf32> to vector<16x32xf32>
    %149 = arith.mulf %144, %148 : vector<16x32xf32>
    %150 = vector.broadcast %130 : vector<1x32xf32> to vector<16x32xf32>
    %151 = arith.mulf %149, %150 : vector<16x32xf32>
    %152 = vector.broadcast %131 : vector<1x32xf32> to vector<16x32xf32>
    %153 = arith.addf %151, %152 : vector<16x32xf32>
    %c64 = arith.constant 64 : index
    %c0_50 = arith.constant 0 : index
    %154 = vector.load %arg2[%c64, %c0_50] : memref<384x128xbf16, #tpu.memory_space<vmem>>, vector<32x64xbf16>
    %155 = arith.truncf %153 : vector<16x32xf32> to vector<16x32xbf16>
    %cst_51 = arith.constant dense<0.000000e+00> : vector<16x64xf32>
    %156 = tpu.matmul %155, %154, %cst_51 {dimension_numbers = #tpu.dot_dimension_numbers<[1], [0], [0], [1], [0, 0, 1, 1], [], []>} : vector<16x32xbf16>, vector<32x64xbf16>, vector<16x64xf32> -> vector<16x64xf32>
    %c6 = arith.constant 6 : index
    %c0_52 = arith.constant 0 : index
    %157 = vector.load %arg3[%c6, %c0_52] : memref<19x128xf32, #tpu.memory_space<vmem>>, vector<1x64xf32>
    %158 = vector.broadcast %157 : vector<1x64xf32> to vector<16x64xf32>
    %159 = arith.addf %156, %158 : vector<16x64xf32>
    %160 = arith.mulf %159, %159 : vector<16x64xf32>
    %161 = arith.mulf %159, %160 : vector<16x64xf32>
    %cst_53 = arith.constant 4.471500e-02 : f32
    %162 = vector.broadcast %cst_53 : f32 to vector<16x64xf32>
    %163 = arith.mulf %162, %161 : vector<16x64xf32>
    %164 = arith.addf %159, %163 : vector<16x64xf32>
    %cst_54 = arith.constant 0.797884583 : f32
    %165 = vector.broadcast %cst_54 : f32 to vector<16x64xf32>
    %166 = arith.mulf %165, %164 : vector<16x64xf32>
    %167 = math.tanh %166 : vector<16x64xf32>
    %cst_55 = arith.constant 1.000000e+00 : f32
    %168 = vector.broadcast %cst_55 : f32 to vector<16x64xf32>
    %169 = arith.addf %168, %167 : vector<16x64xf32>
    %cst_56 = arith.constant 5.000000e-01 : f32
    %170 = vector.broadcast %cst_56 : f32 to vector<16x64xf32>
    %171 = arith.mulf %170, %169 : vector<16x64xf32>
    %172 = arith.mulf %159, %171 : vector<16x64xf32>
    %c96 = arith.constant 96 : index
    %c0_57 = arith.constant 0 : index
    %173 = vector.load %arg2[%c96, %c0_57] : memref<384x128xbf16, #tpu.memory_space<vmem>>, vector<64x32xbf16>
    %174 = arith.truncf %172 : vector<16x64xf32> to vector<16x64xbf16>
    %cst_58 = arith.constant dense<0.000000e+00> : vector<16x32xf32>
    %175 = tpu.matmul %174, %173, %cst_58 {dimension_numbers = #tpu.dot_dimension_numbers<[1], [0], [0], [1], [0, 0, 1, 1], [], []>} : vector<16x64xbf16>, vector<64x32xbf16>, vector<16x32xf32> -> vector<16x32xf32>
    %c7 = arith.constant 7 : index
    %c0_59 = arith.constant 0 : index
    %176 = vector.load %arg3[%c7, %c0_59] : memref<19x128xf32, #tpu.memory_space<vmem>>, vector<1x32xf32>
    %177 = vector.broadcast %176 : vector<1x32xf32> to vector<16x32xf32>
    %178 = arith.addf %175, %177 : vector<16x32xf32>
    %179 = arith.addf %153, %178 : vector<16x32xf32>
    %c8 = arith.constant 8 : index
    %c0_60 = arith.constant 0 : index
    %180 = vector.load %arg3[%c8, %c0_60] : memref<19x128xf32, #tpu.memory_space<vmem>>, vector<1x32xf32>
    %c9 = arith.constant 9 : index
    %c0_61 = arith.constant 0 : index
    %181 = vector.load %arg3[%c9, %c0_61] : memref<19x128xf32, #tpu.memory_space<vmem>>, vector<1x32xf32>
    %cst_62 = arith.constant dense<0.000000e+00> : vector<16xf32>
    %182 = vector.multi_reduction <add>, %179, %cst_62 [1] : vector<16x32xf32> to vector<16xf32>
    %183 = vector.shape_cast %182 : vector<16xf32> to vector<16x1xf32>
    %cst_63 = arith.constant 3.200000e+01 : f32
    %184 = vector.broadcast %cst_63 : f32 to vector<16x1xf32>
    %185 = arith.divf %183, %184 : vector<16x1xf32>
    %186 = vector.broadcast %185 : vector<16x1xf32> to vector<16x32xf32>
    %187 = arith.subf %179, %186 : vector<16x32xf32>
    %188 = arith.mulf %187, %187 : vector<16x32xf32>
    %cst_64 = arith.constant dense<0.000000e+00> : vector<16xf32>
    %189 = vector.multi_reduction <add>, %188, %cst_64 [1] : vector<16x32xf32> to vector<16xf32>
    %190 = vector.shape_cast %189 : vector<16xf32> to vector<16x1xf32>
    %cst_65 = arith.constant 3.200000e+01 : f32
    %191 = vector.broadcast %cst_65 : f32 to vector<16x1xf32>
    %192 = arith.divf %190, %191 : vector<16x1xf32>
    %193 = vector.broadcast %185 : vector<16x1xf32> to vector<16x32xf32>
    %194 = arith.subf %179, %193 : vector<16x32xf32>
    %cst_66 = arith.constant 9.99999996E-13 : f32
    %195 = vector.broadcast %cst_66 : f32 to vector<16x1xf32>
    %196 = arith.addf %192, %195 : vector<16x1xf32>
    %197 = math.rsqrt %196 : vector<16x1xf32>
    %198 = vector.broadcast %197 : vector<16x1xf32> to vector<16x32xf32>
    %199 = arith.mulf %194, %198 : vector<16x32xf32>
    %200 = vector.broadcast %180 : vector<1x32xf32> to vector<16x32xf32>
    %201 = arith.mulf %199, %200 : vector<16x32xf32>
    %202 = vector.broadcast %181 : vector<1x32xf32> to vector<16x32xf32>
    %203 = arith.addf %201, %202 : vector<16x32xf32>
    %c160 = arith.constant 160 : index
    %c0_67 = arith.constant 0 : index
    %204 = vector.load %arg2[%c160, %c0_67] : memref<384x128xbf16, #tpu.memory_space<vmem>>, vector<32x96xbf16>
    %205 = arith.truncf %203 : vector<16x32xf32> to vector<16x32xbf16>
    %cst_68 = arith.constant dense<0.000000e+00> : vector<16x96xf32>
    %206 = tpu.matmul %205, %204, %cst_68 {dimension_numbers = #tpu.dot_dimension_numbers<[1], [0], [0], [1], [0, 0, 1, 1], [], []>} : vector<16x32xbf16>, vector<32x96xbf16>, vector<16x96xf32> -> vector<16x96xf32>
    %c10 = arith.constant 10 : index
    %c0_69 = arith.constant 0 : index
    %207 = vector.load %arg3[%c10, %c0_69] : memref<19x128xf32, #tpu.memory_space<vmem>>, vector<1x96xf32>
    %208 = vector.broadcast %207 : vector<1x96xf32> to vector<16x96xf32>
    %209 = arith.addf %206, %208 : vector<16x96xf32>
    %210 = vector.extract_strided_slice %209 {offsets = [0, 0], sizes = [16, 16], strides = [1, 1]} : vector<16x96xf32> to vector<16x16xf32>
    %211 = vector.extract_strided_slice %209 {offsets = [0, 32], sizes = [16, 16], strides = [1, 1]} : vector<16x96xf32> to vector<16x16xf32>
    %212 = vector.extract_strided_slice %209 {offsets = [0, 64], sizes = [16, 16], strides = [1, 1]} : vector<16x96xf32> to vector<16x16xf32>
    %cst_70 = arith.constant dense<0.000000e+00> : vector<16x16xf32>
    %213 = tpu.matmul %210, %211, %cst_70 {dimension_numbers = #tpu.dot_dimension_numbers<[1], [1], [0], [0], [0, 0, 1, 0], [], []>} : vector<16x16xf32>, vector<16x16xf32>, vector<16x16xf32> -> vector<16x16xf32>
    %cst_71 = arith.constant 2.500000e-01 : f32
    %214 = vector.broadcast %cst_71 : f32 to vector<16x16xf32>
    %215 = arith.mulf %213, %214 : vector<16x16xf32>
    %216 = arith.addf %215, %76 : vector<16x16xf32>
    %cst_72 = arith.constant dense<0xFF800000> : vector<16xf32>
    %217 = vector.multi_reduction <maximumf>, %216, %cst_72 [1] : vector<16x16xf32> to vector<16xf32>
    %218 = vector.shape_cast %217 : vector<16xf32> to vector<16x1xf32>
    %219 = vector.broadcast %218 : vector<16x1xf32> to vector<16x16xf32>
    %220 = arith.subf %216, %219 : vector<16x16xf32>
    %221 = math.exp %220 : vector<16x16xf32>
    %cst_73 = arith.constant dense<0.000000e+00> : vector<16xf32>
    %222 = vector.multi_reduction <add>, %221, %cst_73 [1] : vector<16x16xf32> to vector<16xf32>
    %223 = vector.shape_cast %222 : vector<16xf32> to vector<16x1xf32>
    %224 = tpu.reciprocal %223 {approx = true} : vector<16x1xf32> -> vector<16x1xf32>
    %225 = vector.broadcast %224 : vector<16x1xf32> to vector<16x16xf32>
    %226 = arith.mulf %221, %225 : vector<16x16xf32>
    %cst_74 = arith.constant dense<0.000000e+00> : vector<16x16xf32>
    %227 = tpu.matmul %226, %212, %cst_74 {dimension_numbers = #tpu.dot_dimension_numbers<[1], [0], [0], [1], [0, 0, 1, 1], [], []>} : vector<16x16xf32>, vector<16x16xf32>, vector<16x16xf32> -> vector<16x16xf32>
    %c192 = arith.constant 192 : index
    %c0_75 = arith.constant 0 : index
    %228 = vector.load %arg2[%c192, %c0_75] : memref<384x128xbf16, #tpu.memory_space<vmem>>, vector<16x32xbf16>
    %229 = arith.truncf %227 : vector<16x16xf32> to vector<16x16xbf16>
    %cst_76 = arith.constant dense<0.000000e+00> : vector<16x32xf32>
    %230 = tpu.matmul %229, %228, %cst_76 {dimension_numbers = #tpu.dot_dimension_numbers<[1], [0], [0], [1], [0, 0, 1, 1], [], []>} : vector<16x16xbf16>, vector<16x32xbf16>, vector<16x32xf32> -> vector<16x32xf32>
    %231 = vector.extract_strided_slice %209 {offsets = [0, 16], sizes = [16, 16], strides = [1, 1]} : vector<16x96xf32> to vector<16x16xf32>
    %232 = vector.extract_strided_slice %209 {offsets = [0, 48], sizes = [16, 16], strides = [1, 1]} : vector<16x96xf32> to vector<16x16xf32>
    %233 = vector.extract_strided_slice %209 {offsets = [0, 80], sizes = [16, 16], strides = [1, 1]} : vector<16x96xf32> to vector<16x16xf32>
    %cst_77 = arith.constant dense<0.000000e+00> : vector<16x16xf32>
    %234 = tpu.matmul %231, %232, %cst_77 {dimension_numbers = #tpu.dot_dimension_numbers<[1], [1], [0], [0], [0, 0, 1, 0], [], []>} : vector<16x16xf32>, vector<16x16xf32>, vector<16x16xf32> -> vector<16x16xf32>
    %cst_78 = arith.constant 2.500000e-01 : f32
    %235 = vector.broadcast %cst_78 : f32 to vector<16x16xf32>
    %236 = arith.mulf %234, %235 : vector<16x16xf32>
    %237 = arith.addf %236, %76 : vector<16x16xf32>
    %cst_79 = arith.constant dense<0xFF800000> : vector<16xf32>
    %238 = vector.multi_reduction <maximumf>, %237, %cst_79 [1] : vector<16x16xf32> to vector<16xf32>
    %239 = vector.shape_cast %238 : vector<16xf32> to vector<16x1xf32>
    %240 = vector.broadcast %239 : vector<16x1xf32> to vector<16x16xf32>
    %241 = arith.subf %237, %240 : vector<16x16xf32>
    %242 = math.exp %241 : vector<16x16xf32>
    %cst_80 = arith.constant dense<0.000000e+00> : vector<16xf32>
    %243 = vector.multi_reduction <add>, %242, %cst_80 [1] : vector<16x16xf32> to vector<16xf32>
    %244 = vector.shape_cast %243 : vector<16xf32> to vector<16x1xf32>
    %245 = tpu.reciprocal %244 {approx = true} : vector<16x1xf32> -> vector<16x1xf32>
    %246 = vector.broadcast %245 : vector<16x1xf32> to vector<16x16xf32>
    %247 = arith.mulf %242, %246 : vector<16x16xf32>
    %cst_81 = arith.constant dense<0.000000e+00> : vector<16x16xf32>
    %248 = tpu.matmul %247, %233, %cst_81 {dimension_numbers = #tpu.dot_dimension_numbers<[1], [0], [0], [1], [0, 0, 1, 1], [], []>} : vector<16x16xf32>, vector<16x16xf32>, vector<16x16xf32> -> vector<16x16xf32>
    %c208 = arith.constant 208 : index
    %c0_82 = arith.constant 0 : index
    %249 = vector.load %arg2[%c208, %c0_82] : memref<384x128xbf16, #tpu.memory_space<vmem>>, vector<16x32xbf16>
    %250 = arith.truncf %248 : vector<16x16xf32> to vector<16x16xbf16>
    %cst_83 = arith.constant dense<0.000000e+00> : vector<16x32xf32>
    %251 = tpu.matmul %250, %249, %cst_83 {dimension_numbers = #tpu.dot_dimension_numbers<[1], [0], [0], [1], [0, 0, 1, 1], [], []>} : vector<16x16xbf16>, vector<16x32xbf16>, vector<16x32xf32> -> vector<16x32xf32>
    %252 = arith.addf %230, %251 : vector<16x32xf32>
    %c11 = arith.constant 11 : index
    %c0_84 = arith.constant 0 : index
    %253 = vector.load %arg3[%c11, %c0_84] : memref<19x128xf32, #tpu.memory_space<vmem>>, vector<1x32xf32>
    %254 = vector.broadcast %253 : vector<1x32xf32> to vector<16x32xf32>
    %255 = arith.addf %252, %254 : vector<16x32xf32>
    %256 = arith.addf %203, %255 : vector<16x32xf32>
    %c12 = arith.constant 12 : index
    %c0_85 = arith.constant 0 : index
    %257 = vector.load %arg3[%c12, %c0_85] : memref<19x128xf32, #tpu.memory_space<vmem>>, vector<1x32xf32>
    %c13 = arith.constant 13 : index
    %c0_86 = arith.constant 0 : index
    %258 = vector.load %arg3[%c13, %c0_86] : memref<19x128xf32, #tpu.memory_space<vmem>>, vector<1x32xf32>
    %cst_87 = arith.constant dense<0.000000e+00> : vector<16xf32>
    %259 = vector.multi_reduction <add>, %256, %cst_87 [1] : vector<16x32xf32> to vector<16xf32>
    %260 = vector.shape_cast %259 : vector<16xf32> to vector<16x1xf32>
    %cst_88 = arith.constant 3.200000e+01 : f32
    %261 = vector.broadcast %cst_88 : f32 to vector<16x1xf32>
    %262 = arith.divf %260, %261 : vector<16x1xf32>
    %263 = vector.broadcast %262 : vector<16x1xf32> to vector<16x32xf32>
    %264 = arith.subf %256, %263 : vector<16x32xf32>
    %265 = arith.mulf %264, %264 : vector<16x32xf32>
    %cst_89 = arith.constant dense<0.000000e+00> : vector<16xf32>
    %266 = vector.multi_reduction <add>, %265, %cst_89 [1] : vector<16x32xf32> to vector<16xf32>
    %267 = vector.shape_cast %266 : vector<16xf32> to vector<16x1xf32>
    %cst_90 = arith.constant 3.200000e+01 : f32
    %268 = vector.broadcast %cst_90 : f32 to vector<16x1xf32>
    %269 = arith.divf %267, %268 : vector<16x1xf32>
    %270 = vector.broadcast %262 : vector<16x1xf32> to vector<16x32xf32>
    %271 = arith.subf %256, %270 : vector<16x32xf32>
    %cst_91 = arith.constant 9.99999996E-13 : f32
    %272 = vector.broadcast %cst_91 : f32 to vector<16x1xf32>
    %273 = arith.addf %269, %272 : vector<16x1xf32>
    %274 = math.rsqrt %273 : vector<16x1xf32>
    %275 = vector.broadcast %274 : vector<16x1xf32> to vector<16x32xf32>
    %276 = arith.mulf %271, %275 : vector<16x32xf32>
    %277 = vector.broadcast %257 : vector<1x32xf32> to vector<16x32xf32>
    %278 = arith.mulf %276, %277 : vector<16x32xf32>
    %279 = vector.broadcast %258 : vector<1x32xf32> to vector<16x32xf32>
    %280 = arith.addf %278, %279 : vector<16x32xf32>
    %c224 = arith.constant 224 : index
    %c0_92 = arith.constant 0 : index
    %281 = vector.load %arg2[%c224, %c0_92] : memref<384x128xbf16, #tpu.memory_space<vmem>>, vector<32x64xbf16>
    %282 = arith.truncf %280 : vector<16x32xf32> to vector<16x32xbf16>
    %cst_93 = arith.constant dense<0.000000e+00> : vector<16x64xf32>
    %283 = tpu.matmul %282, %281, %cst_93 {dimension_numbers = #tpu.dot_dimension_numbers<[1], [0], [0], [1], [0, 0, 1, 1], [], []>} : vector<16x32xbf16>, vector<32x64xbf16>, vector<16x64xf32> -> vector<16x64xf32>
    %c14 = arith.constant 14 : index
    %c0_94 = arith.constant 0 : index
    %284 = vector.load %arg3[%c14, %c0_94] : memref<19x128xf32, #tpu.memory_space<vmem>>, vector<1x64xf32>
    %285 = vector.broadcast %284 : vector<1x64xf32> to vector<16x64xf32>
    %286 = arith.addf %283, %285 : vector<16x64xf32>
    %287 = arith.mulf %286, %286 : vector<16x64xf32>
    %288 = arith.mulf %286, %287 : vector<16x64xf32>
    %cst_95 = arith.constant 4.471500e-02 : f32
    %289 = vector.broadcast %cst_95 : f32 to vector<16x64xf32>
    %290 = arith.mulf %289, %288 : vector<16x64xf32>
    %291 = arith.addf %286, %290 : vector<16x64xf32>
    %cst_96 = arith.constant 0.797884583 : f32
    %292 = vector.broadcast %cst_96 : f32 to vector<16x64xf32>
    %293 = arith.mulf %292, %291 : vector<16x64xf32>
    %294 = math.tanh %293 : vector<16x64xf32>
    %cst_97 = arith.constant 1.000000e+00 : f32
    %295 = vector.broadcast %cst_97 : f32 to vector<16x64xf32>
    %296 = arith.addf %295, %294 : vector<16x64xf32>
    %cst_98 = arith.constant 5.000000e-01 : f32
    %297 = vector.broadcast %cst_98 : f32 to vector<16x64xf32>
    %298 = arith.mulf %297, %296 : vector<16x64xf32>
    %299 = arith.mulf %286, %298 : vector<16x64xf32>
    %c256 = arith.constant 256 : index
    %c0_99 = arith.constant 0 : index
    %300 = vector.load %arg2[%c256, %c0_99] : memref<384x128xbf16, #tpu.memory_space<vmem>>, vector<64x32xbf16>
    %301 = arith.truncf %299 : vector<16x64xf32> to vector<16x64xbf16>
    %cst_100 = arith.constant dense<0.000000e+00> : vector<16x32xf32>
    %302 = tpu.matmul %301, %300, %cst_100 {dimension_numbers = #tpu.dot_dimension_numbers<[1], [0], [0], [1], [0, 0, 1, 1], [], []>} : vector<16x64xbf16>, vector<64x32xbf16>, vector<16x32xf32> -> vector<16x32xf32>
    %c15 = arith.constant 15 : index
    %c0_101 = arith.constant 0 : index
    %303 = vector.load %arg3[%c15, %c0_101] : memref<19x128xf32, #tpu.memory_space<vmem>>, vector<1x32xf32>
    %304 = vector.broadcast %303 : vector<1x32xf32> to vector<16x32xf32>
    %305 = arith.addf %302, %304 : vector<16x32xf32>
    %306 = arith.addf %280, %305 : vector<16x32xf32>
    %c16 = arith.constant 16 : index
    %c0_102 = arith.constant 0 : index
    %307 = vector.load %arg3[%c16, %c0_102] : memref<19x128xf32, #tpu.memory_space<vmem>>, vector<1x32xf32>
    %c17 = arith.constant 17 : index
    %c0_103 = arith.constant 0 : index
    %308 = vector.load %arg3[%c17, %c0_103] : memref<19x128xf32, #tpu.memory_space<vmem>>, vector<1x32xf32>
    %cst_104 = arith.constant dense<0.000000e+00> : vector<16xf32>
    %309 = vector.multi_reduction <add>, %306, %cst_104 [1] : vector<16x32xf32> to vector<16xf32>
    %310 = vector.shape_cast %309 : vector<16xf32> to vector<16x1xf32>
    %cst_105 = arith.constant 3.200000e+01 : f32
    %311 = vector.broadcast %cst_105 : f32 to vector<16x1xf32>
    %312 = arith.divf %310, %311 : vector<16x1xf32>
    %313 = vector.broadcast %312 : vector<16x1xf32> to vector<16x32xf32>
    %314 = arith.subf %306, %313 : vector<16x32xf32>
    %315 = arith.mulf %314, %314 : vector<16x32xf32>
    %cst_106 = arith.constant dense<0.000000e+00> : vector<16xf32>
    %316 = vector.multi_reduction <add>, %315, %cst_106 [1] : vector<16x32xf32> to vector<16xf32>
    %317 = vector.shape_cast %316 : vector<16xf32> to vector<16x1xf32>
    %cst_107 = arith.constant 3.200000e+01 : f32
    %318 = vector.broadcast %cst_107 : f32 to vector<16x1xf32>
    %319 = arith.divf %317, %318 : vector<16x1xf32>
    %320 = vector.broadcast %312 : vector<16x1xf32> to vector<16x32xf32>
    %321 = arith.subf %306, %320 : vector<16x32xf32>
    %cst_108 = arith.constant 9.99999996E-13 : f32
    %322 = vector.broadcast %cst_108 : f32 to vector<16x1xf32>
    %323 = arith.addf %319, %322 : vector<16x1xf32>
    %324 = math.rsqrt %323 : vector<16x1xf32>
    %325 = vector.broadcast %324 : vector<16x1xf32> to vector<16x32xf32>
    %326 = arith.mulf %321, %325 : vector<16x32xf32>
    %327 = vector.broadcast %307 : vector<1x32xf32> to vector<16x32xf32>
    %328 = arith.mulf %326, %327 : vector<16x32xf32>
    %329 = vector.broadcast %308 : vector<1x32xf32> to vector<16x32xf32>
    %330 = arith.addf %328, %329 : vector<16x32xf32>
    %c320 = arith.constant 320 : index
    %c0_109 = arith.constant 0 : index
    %331 = vector.load %arg2[%c320, %c0_109] : memref<384x128xbf16, #tpu.memory_space<vmem>>, vector<32x32xbf16>
    %332 = arith.truncf %330 : vector<16x32xf32> to vector<16x32xbf16>
    %cst_110 = arith.constant dense<0.000000e+00> : vector<16x32xf32>
    %333 = tpu.matmul %332, %331, %cst_110 {dimension_numbers = #tpu.dot_dimension_numbers<[1], [0], [0], [1], [0, 0, 1, 1], [], []>} : vector<16x32xbf16>, vector<32x32xbf16>, vector<16x32xf32> -> vector<16x32xf32>
    %c18 = arith.constant 18 : index
    %c0_111 = arith.constant 0 : index
    %334 = vector.load %arg3[%c18, %c0_111] : memref<19x128xf32, #tpu.memory_space<vmem>>, vector<1x32xf32>
    %335 = vector.broadcast %334 : vector<1x32xf32> to vector<16x32xf32>
    %336 = arith.addf %333, %335 : vector<16x32xf32>
    %337 = math.tanh %336 : vector<16x32xf32>
    %c352 = arith.constant 352 : index
    %c0_112 = arith.constant 0 : index
    %338 = vector.load %arg2[%c352, %c0_112] : memref<384x128xbf16, #tpu.memory_space<vmem>>, vector<32x128xbf16>
    %339 = arith.truncf %337 : vector<16x32xf32> to vector<16x32xbf16>
    %cst_113 = arith.constant dense<0.000000e+00> : vector<16x128xf32>
    %340 = tpu.matmul %339, %338, %cst_113 {dimension_numbers = #tpu.dot_dimension_numbers<[1], [0], [0], [1], [0, 0, 1, 1], [], []>} : vector<16x32xbf16>, vector<32x128xbf16>, vector<16x128xf32> -> vector<16x128xf32>
    %c0_114 = arith.constant 0 : index
    %c0_115 = arith.constant 0 : index
    %341 = vector.load %arg4[%c0_114, %c0_115] : memref<48x128xf32, #tpu.memory_space<vmem>>, vector<16x32xf32>
    tpu.vector_store %arg4[%c0_114, %c0_115], %330 {strides = array<i32>} : memref<48x128xf32, #tpu.memory_space<vmem>>, vector<16x32xf32>,
    %c16_116 = arith.constant 16 : index
    %c0_117 = arith.constant 0 : index
    %342 = vector.load %arg4[%c16_116, %c0_117] : memref<48x128xf32, #tpu.memory_space<vmem>>, vector<16x32xf32>
    tpu.vector_store %arg4[%c16_116, %c0_117], %337 {strides = array<i32>} : memref<48x128xf32, #tpu.memory_space<vmem>>, vector<16x32xf32>,
    %c32_118 = arith.constant 32 : index
    %c0_119 = arith.constant 0 : index
    %343 = vector.load %arg4[%c32_118, %c0_119] : memref<48x128xf32, #tpu.memory_space<vmem>>, vector<16x128xf32>
    tpu.vector_store %arg4[%c32_118, %c0_119], %340 {strides = array<i32>} : memref<48x128xf32, #tpu.memory_space<vmem>>, vector<16x128xf32>,
    return
  }
}

</mosaic_0001>

<llo_original>
// kernel: good_bad_bert_forward.1
$region0: #{good_bad_bert_forward.1}
  #allocation0 [shape = 'u32[]', space=smem, size = 0x4, offset = 0x4, fixed_abs, tag = 'smem constant byte address 0x4 - core index']
  #allocation1 [shape = 'u32[144,128]{1,0:T(1,128)}', space=vmem, size = 0x12000, scoped, tag = 'internal scratch']
  %s0 = inlined_call_operand.vmem [shape: s32[16,2], index: 0, kind: input, shape index: {}]
  %s1 = inlined_call_operand.vmem [shape: f32[68,32], index: 1, kind: input, shape index: {}]
  %s2 = inlined_call_operand.hbm [shape: bf16[384,128], index: 2, kind: input, shape index: {}]
  %s3 = inlined_call_operand.vmem [shape: f32[19,128], index: 3, kind: input, shape index: {}]
  %s4 = inlined_call_operand.vmem [shape: f32[48,128], index: 4, kind: output, shape index: {}]
  %s5 = sld [smem:[#allocation0]]
  $region30: #{good_bad_bert_forward.1} parent=0
    _
  %s7 = ssub.s32 1, %s5
  %s8 = scalar_select 0, %s7, %s5
  $region1: #{good_bad_bert_forward.1} parent=0
    #allocation2 [shape = 'u8[98304]{0}', space=vmem, size = 0x18000, scoped, tag = 'input window, operand 2, single buffered']
    #allocation3 [shape = 's32[1]{0}', space=sflag, size = 0x4, scoped, tag = 'scoped memory for good_bad_bert_forward.1']
    %9 = vsyncpa [#allocation3], 0
    // Predicated region
    $region2: #{good_bad_bert_forward.1} parent=1 // pred_check
      _
    $region3: #{good_bad_bert_forward.1} parent=1 // pred_check_branch
      %11 = sbr.rel (0) target = $region5
    $region4: #{good_bad_bert_forward.1} parent=1 // pred_region
      _
    $region5: #{good_bad_bert_forward.1} parent=1 // pred_fallthru
      _
    // Predicated region
    $region6: #{good_bad_bert_forward.1} parent=1 // pred_check
      _
    $region7: #{good_bad_bert_forward.1} parent=1 // pred_check_branch
      %13 = sbr.rel (0) target = $region9
    $region8: #{good_bad_bert_forward.1} parent=1 // pred_region
      _
    $region9: #{good_bad_bert_forward.1} parent=1 // pred_fallthru
      _
    // Predicated region
    $region10: #{good_bad_bert_forward.1} parent=1 // pred_check
      _
    $region11: #{good_bad_bert_forward.1} parent=1 // pred_check_branch
      %15 = sbr.rel (0) target = $region13
    $region12: #{good_bad_bert_forward.1} parent=1 // pred_region
      %s17 = ssub.s32 3072, 3072
      %18 = vsyncadd [#allocation3], %s17
      %s19 = sshll.u32 [#allocation2], 4
      %s20 = int_to_ptr.vmem [resolvable:$true] %s19
      %25 = dma.hbm_to_vmem [thread:$0]  %s2, 3072, %s20, [#allocation3], 64, 64, 4
    $region13: #{good_bad_bert_forward.1} parent=1 // pred_fallthru
      _
    // Predicated region
    $region14: #{good_bad_bert_forward.1} parent=1 // pred_check
      _
    $region15: #{good_bad_bert_forward.1} parent=1 // pred_check_branch
      %27 = sbr.rel (0) target = $region17
    $region16: #{good_bad_bert_forward.1} parent=1 // pred_region
      _
    $region17: #{good_bad_bert_forward.1} parent=1 // pred_fallthru
      _
    // Predicated region
    $region18: #{good_bad_bert_forward.1} parent=1 // pred_check
      _
    $region19: #{good_bad_bert_forward.1} parent=1 // pred_check_branch
      %29 = sbr.rel (0) target = $region21
    $region20: #{good_bad_bert_forward.1} parent=1 // pred_region
      %30 = dma.done [#allocation3], 3072
    $region21: #{good_bad_bert_forward.1} parent=1 // pred_fallthru
      _
    %v32 = vld [vmem:[%s0] sm:$0xff]
    %v33 = vld [vmem:[%s0 + $0x8] sm:$0xff]
    %v34 = vlaneseq
    %v35 = vand.u32 %v34, 127
    %36 = vset.pattern.permute.xlu0 0
    %37 = vperm.xlu0 %36, %v32
    %v38 = vpop.permute.xlu0 %37
    %39 = vset.pattern.permute.xlu0 0
    %40 = vperm.xlu0 %39, %v33
    %v41 = vpop.permute.xlu0 %40
    %vm42 = vcmp.eq.s32.totalorder %v38, %v35
    %vm43 = vcmp.eq.s32.totalorder %v41, %v35
    %v44 = vsel %vm42, 1.0, 0.0
    %v45 = vsel %vm43, 1.0, 0.0
    %v46 = vld [vmem:[%s1] sm:$0xff]
    %v47 = vld [vmem:[%s1 + $0x8] sm:$0xff]
    %v48 = vld [vmem:[%s1 + $0x10] sm:$0xff]
    %v49 = vld [vmem:[%s1 + $0x18] sm:$0xff]
    %v50 = vld [vmem:[%s1 + $0x20] sm:$0xff]
    %v51 = vld [vmem:[%s1 + $0x28] sm:$0xff]
    %v52 = vld [vmem:[%s1 + $0x30] sm:$0x3]
    %vm53 = vcmp.eq.s32.totalorder %v32, 0
    %vm54 = vcmp.eq.s32.totalorder %v33, 0
    %v55 = vld [vmem:[%s1 + $0x32] sm:$0x1]
    %v56 = vld [vmem:[%s1 + $0x33] sm:$0x1]
    %v57 = vsel %vm53, 1, 0
    %v58 = vsel %vm54, 1, 0
    %59 = vset.pattern.permute.xlu0 1
    %60 = vperm.xlu0 %59, %v57
    %v61 = vpop.permute.xlu0 %60
    %62 = vset.pattern.permute.xlu0 1
    %63 = vperm.xlu0 %62, %v58
    %v64 = vpop.permute.xlu0 %63
    %vm65 = vcmp.eq.s32.totalorder %v61, 1
    %vm66 = vcmp.eq.s32.totalorder %v64, 1
    %v67 = vlaneseq
    %v68 = vshrl.u32 %v67, 7
    %v69 = vsub.s32 0, %v68
    %v70 = vrot.slane %v55, %v69
    %v71 = vlaneseq
    %v72 = vshrl.u32 %v71, 7
    %v73 = vsub.s32 0, %v72
    %v74 = vrot.slane %v56, %v73
    %v75 = vsel %vm65, %v70, %v74
    %v76 = vsel %vm66, %v70, %v74
    %v77 = vld [vmem:[%s1 + $0x34] sm:$0xff]
    %v78 = vld [vmem:[%s1 + $0x3c] sm:$0xff]
    %vm79 = vcmask 408576
    %v81 = vsel %vm79, %v44, 0
    %v84 = vsel %vm79, %v45, 0
    %vm86 = vcmask 1041408
    %v88 = vsel %vm86, %v52, 0
    %90 = vmatprep.subr.mxu0 0.0
    %91 = vmatpush1.msra.mxu0 %v46
    %92 = vmatprep.subr.mxu0 0.0
    %93 = vmatpush1.msra.mxu0 %v47
    %94 = vmatprep.subr.mxu0 0.0
    %95 = vmatpush1.msra.mxu0 %v48
    %96 = vmatprep.subr.mxu0 0.0
    %97 = vmatpush1.msra.mxu0 %v49
    %98 = vmatprep.subr.mxu0 0.0
    %99 = vmatpush1.msra.mxu0 %v50
    %100 = vmatprep.subr.mxu0 0.0
    %101 = vmatpush1.msra.mxu0 %v51
    %102 = vmatprep.subr.mxu0 0.0
    %103 = vmatpush1.msra.mxu0 %v88
    %104 = vmatprep.subr.mxu0 0.0
    %105 = vmatpush1.msra.mxu0 0.0
    %106 = vmatprep.subr.mxu0 0.0
    %107 = vmatpush1.msra.mxu0 0.0
    %108 = vmatprep.subr.mxu0 0.0
    %109 = vmatpush1.msra.mxu0 0.0
    %110 = vmatprep.subr.mxu0 0.0
    %111 = vmatpush1.msra.mxu0 0.0
    %112 = vmatprep.subr.mxu0 0.0
    %113 = vmatpush1.msra.mxu0 0.0
    %114 = vmatprep.subr.mxu0 0.0
    %115 = vmatpush1.msra.mxu0 0.0
    %116 = vmatprep.subr.mxu0 0.0
    %117 = vmatpush1.msra.mxu0 0.0
    %118 = vmatprep.subr.mxu0 0.0
    %119 = vmatpush1.msra.mxu0 0.0
    %120 = vmatprep.subr.mxu0 0.0
    %121 = vmatpush1.msra.mxu0 0.0
    %122 = vmatprep.subr.mxu0 0.0
    %123 = vmatpush1.msra.mxu0 0.0
    %124 = vmatprep.subr.mxu0 0.0
    %125 = vmatpush1.msra.mxu0 0.0
    %126 = vmatprep.subr.mxu0 0.0
    %127 = vmatpush1.msra.mxu0 0.0
    %128 = vmatprep.subr.mxu0 0.0
    %129 = vmatpush1.msra.mxu0 0.0
    %130 = vmatprep.subr.mxu0 0.0
    %131 = vmatpush1.msra.mxu0 0.0
    %132 = vmatprep.subr.mxu0 0.0
    %133 = vmatpush1.msra.mxu0 0.0
    %134 = vmatprep.subr.mxu0 0.0
    %135 = vmatpush1.msra.mxu0 0.0
    %136 = vmatprep.subr.mxu0 0.0
    %137 = vmatpush1.msra.mxu0 0.0
    %138 = vmatprep.subr.mxu0 0.0
    %139 = vmatpush1.msra.mxu0 0.0
    %140 = vmatprep.subr.mxu0 0.0
    %141 = vmatpush1.msra.mxu0 0.0
    %142 = vmatprep.subr.mxu0 0.0
    %143 = vmatpush1.msra.mxu0 0.0
    %144 = vmatprep.subr.mxu0 0.0
    %145 = vmatpush1.msra.mxu0 0.0
    %146 = vmatprep.subr.mxu0 0.0
    %147 = vmatpush1.msra.mxu0 0.0
    %148 = vmatprep.subr.mxu0 0.0
    %149 = vmatpush1.msra.mxu0 0.0
    %150 = vmatprep.subr.mxu0 0.0
    %151 = vmatpush1.msra.mxu0 0.0
    %152 = vmatprep.subr.mxu0 0.0
    %153 = vmatpush1.msra.mxu0 0.0
    %154 = vmatprep.mubr.f32.mxu0 0.0
    %155 = vmatmul.mubr.f32.gmra.mrb[0].mxu0 %v81
    %v156 = vpop.f32.mrb[0].mxu0
    %v157 = vadd.f32 %v75, %v156
    %v158 = vpop.f32.mrb[0].mxu0
    %159 = vmatprep.mubr.f32.mxu0 0.0
    %160 = vmatmul.mubr.f32.gmra.mrb[0].mxu0 %v84
    %v161 = vpop.f32.mrb[0].mxu0
    %v162 = vadd.f32 %v76, %v161
    %v163 = vpop.f32.mrb[0].mxu0
    %164 = vdwg.mxu0
    %v165 = vadd.f32 %v157, %v77
    %v166 = vadd.f32 %v162, %v78
    %v167 = vld [vmem:[%s3] sm:$0x1]
    %v168 = vld [vmem:[%s3 + $0x1] sm:$0x1]
    %vm169 = vcmask 261120
    %v170 = vsel %vm169, %v165, 0.0
    %171 = vadd.xlane.f32.xlu0 %v170
    %v172 = vpop.xlane.xlu0 %171
    %v173 = vsel %vm169, %v166, 0.0
    %174 = vadd.xlane.f32.xlu0 %v173
    %v175 = vpop.xlane.xlu0 %174
    %v176 = vrcp.pop 32.0
    %v177 = vmul.f32 %v172, %v176
    %v178 = vmul.f32 %v175, %v176
    %v179 = vsub.f32 %v165, %v177
    %v180 = vsub.f32 %v166, %v178
    %v181 = vmul.f32 %v179, %v179
    %v182 = vmul.f32 %v180, %v180
    %v183 = vsel %vm169, %v181, 0.0
    %184 = vadd.xlane.f32.xlu0 %v183
    %v185 = vpop.xlane.xlu0 %184
    %v186 = vsel %vm169, %v182, 0.0
    %187 = vadd.xlane.f32.xlu0 %v186
    %v188 = vpop.xlane.xlu0 %187
    %v189 = vmul.f32 %v185, %v176
    %v190 = vmul.f32 %v188, %v176
    %v191 = vadd.f32 %v189, 1e-12
    %v192 = vadd.f32 %v190, 1e-12
    %v193 = vrsqrt.pop %v191
    %v194 = vrsqrt.pop %v192
    %v195 = vmul.f32 %v179, %v193
    %v196 = vmul.f32 %v180, %v194
    %v197 = vlaneseq
    %v198 = vshrl.u32 %v197, 7
    %v199 = vsub.s32 0, %v198
    %v200 = vrot.slane %v167, %v199
    %v201 = vmul.f32 %v195, %v200
    %v202 = vmul.f32 %v196, %v200
    %v203 = vlaneseq
    %v204 = vshrl.u32 %v203, 7
    %v205 = vsub.s32 0, %v204
    %v206 = vrot.slane %v168, %v205
    %v207 = vadd.f32 %v201, %v206
    %v208 = vadd.f32 %v202, %v206
    %v209 = vlaneseq
    %v210 = vshrl.u32 %v209, 7
    %v211 = vadd.s32 %v210, 8
    %vm212 = vcmp.ge.s32.totalorder %v210, 0
    %vm213 = vcmp.ge.s32.totalorder %v211, 0
    %vm214 = vcmp.lt.s32.totalorder %v210, 8
    %vm215 = vcmp.lt.s32.totalorder %v211, 8
    %vm216 = vmand %vm212, %vm214
    %vm217 = vmand %vm213, %vm215
    %vm218 = vcmp.ge.s32.totalorder %v35, 0
    %vm219 = vcmp.lt.s32.totalorder %v35, 8
    %vm220 = vmand %vm218, %vm219
    %vm221 = vmand %vm216, %vm220
    %vm222 = vmand %vm217, %vm220
    %vm223 = vcmp.ge.s32.totalorder %v210, 8
    %vm224 = vcmp.ge.s32.totalorder %v211, 8
    %vm225 = vcmp.lt.s32.totalorder %v210, 16
    %vm226 = vcmp.lt.s32.totalorder %v211, 16
    %vm227 = vmand %vm223, %vm225
    %vm228 = vmand %vm224, %vm226
    %vm229 = vcmp.ge.s32.totalorder %v35, 8
    %vm230 = vcmp.lt.s32.totalorder %v35, 16
    %vm231 = vmand %vm229, %vm230
    %vm232 = vmand %vm227, %vm231
    %vm233 = vmand %vm228, %vm231
    %vm234 = vmor %vm221, %vm232
    %vm235 = vmor %vm222, %vm233
    %v236 = vsel %vm234, 0.0, -1e+30
    %v237 = vsel %vm235, 0.0, -1e+30
    %v238 = vld [vmem:[#allocation2] sm:$0xf]
    %v239 = vld [vmem:[#allocation2 + $0x4] sm:$0xf]
    %v240 = vld [vmem:[#allocation2 + $0x8] sm:$0xf]
    %v241 = vld [vmem:[#allocation2 + $0xc] sm:$0xf]
    %v242 = vpack.c.bf16 %v208, %v207
    %v243 = vld [vmem:[%s3 + $0x2] sm:$0x1]
    %v244 = vlaneseq
    %v245 = vshrl.u32 %v244, 7
    %v246 = vsub.s32 0, %v245
    %v247 = vrot.slane %v243, %v246
    %v252 = vunpack.c.l.b16 %v238
    %v253 = vunpack.c.l.b16 %v239
    %v254 = vunpack.c.l.b16 %v240
    %v255 = vunpack.c.l.b16 %v241
    %v256 = vpack.c.b16 %v253, %v252
    %v257 = vpack.c.b16 %v255, %v254
    %v261 = vsel %vm169, %v242, 0
    %263 = vmatprep.subr.bf16.mxu0 0
    %264 = vmatpush1.bf16.msra.mxu0 %v256
    %265 = vmatprep.subr.bf16.mxu0 0
    %266 = vmatpush1.bf16.msra.mxu0 %v257
    %267 = vmatprep.subr.bf16.mxu0 0
    %268 = vmatpush1.bf16.msra.mxu0 0
    %269 = vmatprep.subr.bf16.mxu0 0
    %270 = vmatpush1.bf16.msra.mxu0 0
    %271 = vmatprep.subr.bf16.mxu0 0
    %272 = vmatpush1.bf16.msra.mxu0 0
    %273 = vmatprep.subr.bf16.mxu0 0
    %274 = vmatpush1.bf16.msra.mxu0 0
    %275 = vmatprep.subr.bf16.mxu0 0
    %276 = vmatpush1.bf16.msra.mxu0 0
    %277 = vmatprep.subr.bf16.mxu0 0
    %278 = vmatpush1.bf16.msra.mxu0 0
    %279 = vmatprep.subr.bf16.mxu0 0
    %280 = vmatpush1.bf16.msra.mxu0 0
    %281 = vmatprep.subr.bf16.mxu0 0
    %282 = vmatpush1.bf16.msra.mxu0 0
    %283 = vmatprep.subr.bf16.mxu0 0
    %284 = vmatpush1.bf16.msra.mxu0 0
    %285 = vmatprep.subr.bf16.mxu0 0
    %286 = vmatpush1.bf16.msra.mxu0 0
    %287 = vmatprep.subr.bf16.mxu0 0
    %288 = vmatpush1.bf16.msra.mxu0 0
    %289 = vmatprep.subr.bf16.mxu0 0
    %290 = vmatpush1.bf16.msra.mxu0 0
    %291 = vmatprep.subr.bf16.mxu0 0
    %292 = vmatpush1.bf16.msra.mxu0 0
    %293 = vmatprep.subr.bf16.mxu0 0
    %294 = vmatpush1.bf16.msra.mxu0 0
    %295 = vmatprep.mubr.bf16.mxu0 0
    %296 = vmatmul.mubr.bf16.gmra.mrb[0].mxu0 %v261
    %v297 = vpop.f32.mrb[0].mxu0
    %v298 = vadd.f32 %v247, %v297
    %v299 = vpop.f32.mrb[0].mxu0
    %v300 = vpop.f32.mrb[0].mxu0
    %v301 = vadd.f32 %v247, %v300
    %v302 = vpop.f32.mrb[0].mxu0
    %303 = vdwg.mxu0
    %306 = vrot.lane.b32.xlu0 %v298, 96
    %v307 = vpop.permute.xlu0 %306
    %308 = vrot.lane.b32.xlu0 %v301, 96
    %v309 = vpop.permute.xlu0 %308
    %vm310 = vcmask 130048
    %v311 = vsel %vm310, %v298, 0
    %v313 = vsel %vm310, %v301, 0
    %v315 = vsel %vm310, %v307, 0
    %v317 = vsel %vm310, %v309, 0
    %319 = vmatprep.subr.mxu0 0.0
    %320 = vmatpush1.xpose.msra.mxu0 %v315
    %321 = vmatprep.subr.mxu0 0.0
    %322 = vmatpush1.xpose.msra.mxu0 %v317
    %323 = vmatprep.subr.mxu0 0.0
    %324 = vmatpush1.xpose.msra.mxu0 0.0
    %325 = vmatprep.subr.mxu0 0.0
    %326 = vmatpush1.xpose.msra.mxu0 0.0
    %327 = vmatprep.subr.mxu0 0.0
    %328 = vmatpush1.xpose.msra.mxu0 0.0
    %329 = vmatprep.subr.mxu0 0.0
    %330 = vmatpush1.xpose.msra.mxu0 0.0
    %331 = vmatprep.subr.mxu0 0.0
    %332 = vmatpush1.xpose.msra.mxu0 0.0
    %333 = vmatprep.subr.mxu0 0.0
    %334 = vmatpush1.xpose.msra.mxu0 0.0
    %335 = vmatprep.subr.mxu0 0.0
    %336 = vmatpush1.xpose.msra.mxu0 0.0
    %337 = vmatprep.subr.mxu0 0.0
    %338 = vmatpush1.xpose.msra.mxu0 0.0
    %339 = vmatprep.subr.mxu0 0.0
    %340 = vmatpush1.xpose.msra.mxu0 0.0
    %341 = vmatprep.subr.mxu0 0.0
    %342 = vmatpush1.xpose.msra.mxu0 0.0
    %343 = vmatprep.subr.mxu0 0.0
    %344 = vmatpush1.xpose.msra.mxu0 0.0
    %345 = vmatprep.subr.mxu0 0.0
    %346 = vmatpush1.xpose.msra.mxu0 0.0
    %347 = vmatprep.subr.mxu0 0.0
    %348 = vmatpush1.xpose.msra.mxu0 0.0
    %349 = vmatprep.subr.mxu0 0.0
    %350 = vmatpush1.xpose.msra.mxu0 0.0
    %351 = vmatprep.subr.mxu0 0.0
    %352 = vmatpush1.xpose.msra.mxu0 0.0
    %353 = vmatprep.subr.mxu0 0.0
    %354 = vmatpush1.xpose.msra.mxu0 0.0
    %355 = vmatprep.subr.mxu0 0.0
    %356 = vmatpush1.xpose.msra.mxu0 0.0
    %357 = vmatprep.subr.mxu0 0.0
    %358 = vmatpush1.xpose.msra.mxu0 0.0
    %359 = vmatprep.subr.mxu0 0.0
    %360 = vmatpush1.xpose.msra.mxu0 0.0
    %361 = vmatprep.subr.mxu0 0.0
    %362 = vmatpush1.xpose.msra.mxu0 0.0
    %363 = vmatprep.subr.mxu0 0.0
    %364 = vmatpush1.xpose.msra.mxu0 0.0
    %365 = vmatprep.subr.mxu0 0.0
    %366 = vmatpush1.xpose.msra.mxu0 0.0
    %367 = vmatprep.subr.mxu0 0.0
    %368 = vmatpush1.xpose.msra.mxu0 0.0
    %369 = vmatprep.subr.mxu0 0.0
    %370 = vmatpush1.xpose.msra.mxu0 0.0
    %371 = vmatprep.subr.mxu0 0.0
    %372 = vmatpush1.xpose.msra.mxu0 0.0
    %373 = vmatprep.subr.mxu0 0.0
    %374 = vmatpush1.xpose.msra.mxu0 0.0
    %375 = vmatprep.subr.mxu0 0.0
    %376 = vmatpush1.xpose.msra.mxu0 0.0
    %377 = vmatprep.subr.mxu0 0.0
    %378 = vmatpush1.xpose.msra.mxu0 0.0
    %379 = vmatprep.subr.mxu0 0.0
    %380 = vmatpush1.xpose.msra.mxu0 0.0
    %381 = vmatprep.subr.mxu0 0.0
    %382 = vmatpush1.xpose.msra.mxu0 0.0
    %383 = vmatprep.mubr.f32.mxu0 0.0
    %384 = vmatmul.mubr.f32.gmra.mrb[0].mxu0 %v311
    %v385 = vpop.f32.mrb[0].mxu0
    %v386 = vadd.f32 0.0, %v385
    %v387 = vpop.f32.mrb[0].mxu0
    %388 = vmatprep.mubr.f32.mxu0 0.0
    %389 = vmatmul.mubr.f32.gmra.mrb[0].mxu0 %v313
    %v390 = vpop.f32.mrb[0].mxu0
    %v391 = vadd.f32 0.0, %v390
    %v392 = vpop.f32.mrb[0].mxu0
    %393 = vdwg.mxu0
    %v394 = vmul.f32 %v386, 0.25
    %v395 = vmul.f32 %v391, 0.25
    %v396 = vadd.f32 %v394, %v236
    %v397 = vadd.f32 %v395, %v237
    %v398 = vsel %vm310, %v396, -inf
    %399 = vmax.xlane.f32.xlu0 %v398
    %v400 = vpop.xlane.xlu0 %399
    %v401 = vsel %vm310, %v397, -inf
    %402 = vmax.xlane.f32.xlu0 %v401
    %v403 = vpop.xlane.xlu0 %402
    %v404 = vsub.f32 %v396, %v400
    %v405 = vsub.f32 %v397, %v403
    %v406 = vmul.f32 %v404, 1.442695
    %v407 = vpow.pop %v406
    %v408 = vmul.f32 %v405, 1.442695
    %v409 = vpow.pop %v408
    %v410 = vsel %vm310, %v407, 0.0
    %411 = vadd.xlane.f32.xlu0 %v410
    %v412 = vpop.xlane.xlu0 %411
    %v413 = vsel %vm310, %v409, 0.0
    %414 = vadd.xlane.f32.xlu0 %v413
    %v415 = vpop.xlane.xlu0 %414
    %v416 = vrcp.pop %v412
    %v417 = vrcp.pop %v415
    %v418 = vmul.f32 %v407, %v416
    %v419 = vmul.f32 %v409, %v417
    %420 = vrot.lane.b32.xlu0 %v298, 64
    %v421 = vpop.permute.xlu0 %420
    %422 = vrot.lane.b32.xlu0 %v301, 64
    %v423 = vpop.permute.xlu0 %422
    %v427 = vsel %vm310, %v418, 0
    %v430 = vsel %vm310, %v419, 0
    %432 = vmatprep.subr.mxu0 0.0
    %433 = vmatpush1.msra.mxu0 %v421
    %434 = vmatprep.subr.mxu0 0.0
    %435 = vmatpush1.msra.mxu0 %v423
    %436 = vmatprep.subr.mxu0 0.0
    %437 = vmatpush1.msra.mxu0 0.0
    %438 = vmatprep.subr.mxu0 0.0
    %439 = vmatpush1.msra.mxu0 0.0
    %440 = vmatprep.subr.mxu0 0.0
    %441 = vmatpush1.msra.mxu0 0.0
    %442 = vmatprep.subr.mxu0 0.0
    %443 = vmatpush1.msra.mxu0 0.0
    %444 = vmatprep.subr.mxu0 0.0
    %445 = vmatpush1.msra.mxu0 0.0
    %446 = vmatprep.subr.mxu0 0.0
    %447 = vmatpush1.msra.mxu0 0.0
    %448 = vmatprep.subr.mxu0 0.0
    %449 = vmatpush1.msra.mxu0 0.0
    %450 = vmatprep.subr.mxu0 0.0
    %451 = vmatpush1.msra.mxu0 0.0
    %452 = vmatprep.subr.mxu0 0.0
    %453 = vmatpush1.msra.mxu0 0.0
    %454 = vmatprep.subr.mxu0 0.0
    %455 = vmatpush1.msra.mxu0 0.0
    %456 = vmatprep.subr.mxu0 0.0
    %457 = vmatpush1.msra.mxu0 0.0
    %458 = vmatprep.subr.mxu0 0.0
    %459 = vmatpush1.msra.mxu0 0.0
    %460 = vmatprep.subr.mxu0 0.0
    %461 = vmatpush1.msra.mxu0 0.0
    %462 = vmatprep.subr.mxu0 0.0
    %463 = vmatpush1.msra.mxu0 0.0
    %464 = vmatprep.subr.mxu0 0.0
    %465 = vmatpush1.msra.mxu0 0.0
    %466 = vmatprep.subr.mxu0 0.0
    %467 = vmatpush1.msra.mxu0 0.0
    %468 = vmatprep.subr.mxu0 0.0
    %469 = vmatpush1.msra.mxu0 0.0
    %470 = vmatprep.subr.mxu0 0.0
    %471 = vmatpush1.msra.mxu0 0.0
    %472 = vmatprep.subr.mxu0 0.0
    %473 = vmatpush1.msra.mxu0 0.0
    %474 = vmatprep.subr.mxu0 0.0
    %475 = vmatpush1.msra.mxu0 0.0
    %476 = vmatprep.subr.mxu0 0.0
    %477 = vmatpush1.msra.mxu0 0.0
    %478 = vmatprep.subr.mxu0 0.0
    %479 = vmatpush1.msra.mxu0 0.0
    %480 = vmatprep.subr.mxu0 0.0
    %481 = vmatpush1.msra.mxu0 0.0
    %482 = vmatprep.subr.mxu0 0.0
    %483 = vmatpush1.msra.mxu0 0.0
    %484 = vmatprep.subr.mxu0 0.0
    %485 = vmatpush1.msra.mxu0 0.0
    %486 = vmatprep.subr.mxu0 0.0
    %487 = vmatpush1.msra.mxu0 0.0
    %488 = vmatprep.subr.mxu0 0.0
    %489 = vmatpush1.msra.mxu0 0.0
    %490 = vmatprep.subr.mxu0 0.0
    %491 = vmatpush1.msra.mxu0 0.0
    %492 = vmatprep.subr.mxu0 0.0
    %493 = vmatpush1.msra.mxu0 0.0
    %494 = vmatprep.subr.mxu0 0.0
    %495 = vmatpush1.msra.mxu0 0.0
    %496 = vmatprep.mubr.f32.mxu0 0.0
    %497 = vmatmul.mubr.f32.gmra.mrb[0].mxu0 %v427
    %v498 = vpop.f32.mrb[0].mxu0
    %v499 = vadd.f32 0.0, %v498
    %v500 = vpop.f32.mrb[0].mxu0
    %501 = vmatprep.mubr.f32.mxu0 0.0
    %502 = vmatmul.mubr.f32.gmra.mrb[0].mxu0 %v430
    %v503 = vpop.f32.mrb[0].mxu0
    %v504 = vadd.f32 0.0, %v503
    %v505 = vpop.f32.mrb[0].mxu0
    %506 = vdwg.mxu0
    %v507 = vld [vmem:[#allocation2 + $0x10] sm:$0xf]
    %v508 = vld [vmem:[#allocation2 + $0x14] sm:$0xf]
    %v509 = vpack.c.bf16 %v504, %v499
    %510 = vrot.lane.b32.xlu0 %v298, 112
    %v511 = vpop.permute.xlu0 %510
    %512 = vrot.lane.b32.xlu0 %v301, 112
    %v513 = vpop.permute.xlu0 %512
    %514 = vrot.lane.b32.xlu0 %v298, 80
    %v515 = vpop.permute.xlu0 %514
    %516 = vrot.lane.b32.xlu0 %v301, 80
    %v517 = vpop.permute.xlu0 %516
    %v518 = vsel %vm310, %v511, 0
    %v520 = vsel %vm310, %v513, 0
    %v522 = vsel %vm310, %v515, 0
    %v524 = vsel %vm310, %v517, 0
    %526 = vmatprep.subr.mxu0 0.0
    %527 = vmatpush1.xpose.msra.mxu0 %v522
    %528 = vmatprep.subr.mxu0 0.0
    %529 = vmatpush1.xpose.msra.mxu0 %v524
    %530 = vmatprep.subr.mxu0 0.0
    %531 = vmatpush1.xpose.msra.mxu0 0.0
    %532 = vmatprep.subr.mxu0 0.0
    %533 = vmatpush1.xpose.msra.mxu0 0.0
    %534 = vmatprep.subr.mxu0 0.0
    %535 = vmatpush1.xpose.msra.mxu0 0.0
    %536 = vmatprep.subr.mxu0 0.0
    %537 = vmatpush1.xpose.msra.mxu0 0.0
    %538 = vmatprep.subr.mxu0 0.0
    %539 = vmatpush1.xpose.msra.mxu0 0.0
    %540 = vmatprep.subr.mxu0 0.0
    %541 = vmatpush1.xpose.msra.mxu0 0.0
    %542 = vmatprep.subr.mxu0 0.0
    %543 = vmatpush1.xpose.msra.mxu0 0.0
    %544 = vmatprep.subr.mxu0 0.0
    %545 = vmatpush1.xpose.msra.mxu0 0.0
    %546 = vmatprep.subr.mxu0 0.0
    %547 = vmatpush1.xpose.msra.mxu0 0.0
    %548 = vmatprep.subr.mxu0 0.0
    %549 = vmatpush1.xpose.msra.mxu0 0.0
    %550 = vmatprep.subr.mxu0 0.0
    %551 = vmatpush1.xpose.msra.mxu0 0.0
    %552 = vmatprep.subr.mxu0 0.0
    %553 = vmatpush1.xpose.msra.mxu0 0.0
    %554 = vmatprep.subr.mxu0 0.0
    %555 = vmatpush1.xpose.msra.mxu0 0.0
    %556 = vmatprep.subr.mxu0 0.0
    %557 = vmatpush1.xpose.msra.mxu0 0.0
    %558 = vmatprep.subr.mxu0 0.0
    %559 = vmatpush1.xpose.msra.mxu0 0.0
    %560 = vmatprep.subr.mxu0 0.0
    %561 = vmatpush1.xpose.msra.mxu0 0.0
    %562 = vmatprep.subr.mxu0 0.0
    %563 = vmatpush1.xpose.msra.mxu0 0.0
    %564 = vmatprep.subr.mxu0 0.0
    %565 = vmatpush1.xpose.msra.mxu0 0.0
    %566 = vmatprep.subr.mxu0 0.0
    %567 = vmatpush1.xpose.msra.mxu0 0.0
    %568 = vmatprep.subr.mxu0 0.0
    %569 = vmatpush1.xpose.msra.mxu0 0.0
    %570 = vmatprep.subr.mxu0 0.0
    %571 = vmatpush1.xpose.msra.mxu0 0.0
    %572 = vmatprep.subr.mxu0 0.0
    %573 = vmatpush1.xpose.msra.mxu0 0.0
    %574 = vmatprep.subr.mxu0 0.0
    %575 = vmatpush1.xpose.msra.mxu0 0.0
    %576 = vmatprep.subr.mxu0 0.0
    %577 = vmatpush1.xpose.msra.mxu0 0.0
    %578 = vmatprep.subr.mxu0 0.0
    %579 = vmatpush1.xpose.msra.mxu0 0.0
    %580 = vmatprep.subr.mxu0 0.0
    %581 = vmatpush1.xpose.msra.mxu0 0.0
    %582 = vmatprep.subr.mxu0 0.0
    %583 = vmatpush1.xpose.msra.mxu0 0.0
    %584 = vmatprep.subr.mxu0 0.0
    %585 = vmatpush1.xpose.msra.mxu0 0.0
    %586 = vmatprep.subr.mxu0 0.0
    %587 = vmatpush1.xpose.msra.mxu0 0.0
    %588 = vmatprep.subr.mxu0 0.0
    %589 = vmatpush1.xpose.msra.mxu0 0.0
    %590 = vmatprep.mubr.f32.mxu0 0.0
    %591 = vmatmul.mubr.f32.gmra.mrb[0].mxu0 %v518
    %v592 = vpop.f32.mrb[0].mxu0
    %v593 = vadd.f32 0.0, %v592
    %v594 = vpop.f32.mrb[0].mxu0
    %595 = vmatprep.mubr.f32.mxu0 0.0
    %596 = vmatmul.mubr.f32.gmra.mrb[0].mxu0 %v520
    %v597 = vpop.f32.mrb[0].mxu0
    %v598 = vadd.f32 0.0, %v597
    %v599 = vpop.f32.mrb[0].mxu0
    %600 = vdwg.mxu0
    %v601 = vmul.f32 %v593, 0.25
    %v602 = vmul.f32 %v598, 0.25
    %v603 = vadd.f32 %v601, %v236
    %v604 = vadd.f32 %v602, %v237
    %v605 = vsel %vm310, %v603, -inf
    %606 = vmax.xlane.f32.xlu0 %v605
    %v607 = vpop.xlane.xlu0 %606
    %v608 = vsel %vm310, %v604, -inf
    %609 = vmax.xlane.f32.xlu0 %v608
    %v610 = vpop.xlane.xlu0 %609
    %v611 = vsub.f32 %v603, %v607
    %v612 = vsub.f32 %v604, %v610
    %v613 = vmul.f32 %v611, 1.442695
    %v614 = vpow.pop %v613
    %v615 = vmul.f32 %v612, 1.442695
    %v616 = vpow.pop %v615
    %v617 = vsel %vm310, %v614, 0.0
    %618 = vadd.xlane.f32.xlu0 %v617
    %v619 = vpop.xlane.xlu0 %618
    %v620 = vsel %vm310, %v616, 0.0
    %621 = vadd.xlane.f32.xlu0 %v620
    %v622 = vpop.xlane.xlu0 %621
    %v623 = vrcp.pop %v619
    %v624 = vrcp.pop %v622
    %v625 = vmul.f32 %v614, %v623
    %v626 = vmul.f32 %v616, %v624
    %627 = vrot.lane.b32.xlu0 %v298, 48
    %v628 = vpop.permute.xlu0 %627
    %629 = vrot.lane.b32.xlu0 %v301, 48
    %v630 = vpop.permute.xlu0 %629
    %v634 = vsel %vm310, %v625, 0
    %v637 = vsel %vm310, %v626, 0
    %639 = vmatprep.subr.mxu0 0.0
    %640 = vmatpush1.msra.mxu0 %v628
    %641 = vmatprep.subr.mxu0 0.0
    %642 = vmatpush1.msra.mxu0 %v630
    %643 = vmatprep.subr.mxu0 0.0
    %644 = vmatpush1.msra.mxu0 0.0
    %645 = vmatprep.subr.mxu0 0.0
    %646 = vmatpush1.msra.mxu0 0.0
    %647 = vmatprep.subr.mxu0 0.0
    %648 = vmatpush1.msra.mxu0 0.0
    %649 = vmatprep.subr.mxu0 0.0
    %650 = vmatpush1.msra.mxu0 0.0
    %651 = vmatprep.subr.mxu0 0.0
    %652 = vmatpush1.msra.mxu0 0.0
    %653 = vmatprep.subr.mxu0 0.0
    %654 = vmatpush1.msra.mxu0 0.0
    %655 = vmatprep.subr.mxu0 0.0
    %656 = vmatpush1.msra.mxu0 0.0
    %657 = vmatprep.subr.mxu0 0.0
    %658 = vmatpush1.msra.mxu0 0.0
    %659 = vmatprep.subr.mxu0 0.0
    %660 = vmatpush1.msra.mxu0 0.0
    %661 = vmatprep.subr.mxu0 0.0
    %662 = vmatpush1.msra.mxu0 0.0
    %663 = vmatprep.subr.mxu0 0.0
    %664 = vmatpush1.msra.mxu0 0.0
    %665 = vmatprep.subr.mxu0 0.0
    %666 = vmatpush1.msra.mxu0 0.0
    %667 = vmatprep.subr.mxu0 0.0
    %668 = vmatpush1.msra.mxu0 0.0
    %669 = vmatprep.subr.mxu0 0.0
    %670 = vmatpush1.msra.mxu0 0.0
    %671 = vmatprep.subr.mxu0 0.0
    %672 = vmatpush1.msra.mxu0 0.0
    %673 = vmatprep.subr.mxu0 0.0
    %674 = vmatpush1.msra.mxu0 0.0
    %675 = vmatprep.subr.mxu0 0.0
    %676 = vmatpush1.msra.mxu0 0.0
    %677 = vmatprep.subr.mxu0 0.0
    %678 = vmatpush1.msra.mxu0 0.0
    %679 = vmatprep.subr.mxu0 0.0
    %680 = vmatpush1.msra.mxu0 0.0
    %681 = vmatprep.subr.mxu0 0.0
    %682 = vmatpush1.msra.mxu0 0.0
    %683 = vmatprep.subr.mxu0 0.0
    %684 = vmatpush1.msra.mxu0 0.0
    %685 = vmatprep.subr.mxu0 0.0
    %686 = vmatpush1.msra.mxu0 0.0
    %687 = vmatprep.subr.mxu0 0.0
    %688 = vmatpush1.msra.mxu0 0.0
    %689 = vmatprep.subr.mxu0 0.0
    %690 = vmatpush1.msra.mxu0 0.0
    %691 = vmatprep.subr.mxu0 0.0
    %692 = vmatpush1.msra.mxu0 0.0
    %693 = vmatprep.subr.mxu0 0.0
    %694 = vmatpush1.msra.mxu0 0.0
    %695 = vmatprep.subr.mxu0 0.0
    %696 = vmatpush1.msra.mxu0 0.0
    %697 = vmatprep.subr.mxu0 0.0
    %698 = vmatpush1.msra.mxu0 0.0
    %699 = vmatprep.subr.mxu0 0.0
    %700 = vmatpush1.msra.mxu0 0.0
    %701 = vmatprep.subr.mxu0 0.0
    %702 = vmatpush1.msra.mxu0 0.0
    %703 = vmatprep.mubr.f32.mxu0 0.0
    %704 = vmatmul.mubr.f32.gmra.mrb[0].mxu0 %v634
    %v705 = vpop.f32.mrb[0].mxu0
    %v706 = vadd.f32 0.0, %v705
    %v707 = vpop.f32.mrb[0].mxu0
    %708 = vmatprep.mubr.f32.mxu0 0.0
    %709 = vmatmul.mubr.f32.gmra.mrb[0].mxu0 %v637
    %v710 = vpop.f32.mrb[0].mxu0
    %v711 = vadd.f32 0.0, %v710
    %v712 = vpop.f32.mrb[0].mxu0
    %713 = vdwg.mxu0
    %v714 = vld [vmem:[#allocation2 + $0x18] sm:$0xf]
    %v715 = vld [vmem:[#allocation2 + $0x1c] sm:$0xf]
    %v716 = vpack.c.bf16 %v711, %v706
    %v719 = vunpack.c.l.b16 %v714
    %v720 = vunpack.c.l.b16 %v715
    %v721 = vpack.c.b16 %v720, %v719
    %v724 = vsel %vm310, %v716, 0
    %726 = vmatprep.subr.bf16.mxu0 0
    %727 = vmatpush1.bf16.msra.mxu0 %v721
    %728 = vmatprep.subr.bf16.mxu0 0
    %729 = vmatpush1.bf16.msra.mxu0 0
    %730 = vmatprep.subr.bf16.mxu0 0
    %731 = vmatpush1.bf16.msra.mxu0 0
    %732 = vmatprep.subr.bf16.mxu0 0
    %733 = vmatpush1.bf16.msra.mxu0 0
    %734 = vmatprep.subr.bf16.mxu0 0
    %735 = vmatpush1.bf16.msra.mxu0 0
    %736 = vmatprep.subr.bf16.mxu0 0
    %737 = vmatpush1.bf16.msra.mxu0 0
    %738 = vmatprep.subr.bf16.mxu0 0
    %739 = vmatpush1.bf16.msra.mxu0 0
    %740 = vmatprep.subr.bf16.mxu0 0
    %741 = vmatpush1.bf16.msra.mxu0 0
    %742 = vmatprep.subr.bf16.mxu0 0
    %743 = vmatpush1.bf16.msra.mxu0 0
    %744 = vmatprep.subr.bf16.mxu0 0
    %745 = vmatpush1.bf16.msra.mxu0 0
    %746 = vmatprep.subr.bf16.mxu0 0
    %747 = vmatpush1.bf16.msra.mxu0 0
    %748 = vmatprep.subr.bf16.mxu0 0
    %749 = vmatpush1.bf16.msra.mxu0 0
    %750 = vmatprep.subr.bf16.mxu0 0
    %751 = vmatpush1.bf16.msra.mxu0 0
    %752 = vmatprep.subr.bf16.mxu0 0
    %753 = vmatpush1.bf16.msra.mxu0 0
    %754 = vmatprep.subr.bf16.mxu0 0
    %755 = vmatpush1.bf16.msra.mxu0 0
    %756 = vmatprep.subr.bf16.mxu0 0
    %757 = vmatpush1.bf16.msra.mxu0 0
    %758 = vmatprep.mubr.bf16.mxu0 0
    %759 = vmatmul.mubr.bf16.gmra.mrb[0].mxu0 %v724
    %v760 = vpop.f32.mrb[0].mxu0
    %v761 = vadd.f32 0.0, %v760
    %v762 = vpop.f32.mrb[0].mxu0
    %v763 = vpop.f32.mrb[0].mxu0
    %v764 = vadd.f32 0.0, %v763
    %v765 = vpop.f32.mrb[0].mxu0
    %766 = vdwg.mxu0
    %v769 = vunpack.c.l.b16 %v507
    %v770 = vunpack.c.l.b16 %v508
    %v771 = vpack.c.b16 %v770, %v769
    %v774 = vsel %vm310, %v509, 0
    %776 = vmatprep.subr.bf16.mxu0 0
    %777 = vmatpush1.bf16.msra.mxu0 %v771
    %778 = vmatprep.subr.bf16.mxu0 0
    %779 = vmatpush1.bf16.msra.mxu0 0
    %780 = vmatprep.subr.bf16.mxu0 0
    %781 = vmatpush1.bf16.msra.mxu0 0
    %782 = vmatprep.subr.bf16.mxu0 0
    %783 = vmatpush1.bf16.msra.mxu0 0
    %784 = vmatprep.subr.bf16.mxu0 0
    %785 = vmatpush1.bf16.msra.mxu0 0
    %786 = vmatprep.subr.bf16.mxu0 0
    %787 = vmatpush1.bf16.msra.mxu0 0
    %788 = vmatprep.subr.bf16.mxu0 0
    %789 = vmatpush1.bf16.msra.mxu0 0
    %790 = vmatprep.subr.bf16.mxu0 0
    %791 = vmatpush1.bf16.msra.mxu0 0
    %792 = vmatprep.subr.bf16.mxu0 0
    %793 = vmatpush1.bf16.msra.mxu0 0
    %794 = vmatprep.subr.bf16.mxu0 0
    %795 = vmatpush1.bf16.msra.mxu0 0
    %796 = vmatprep.subr.bf16.mxu0 0
    %797 = vmatpush1.bf16.msra.mxu0 0
    %798 = vmatprep.subr.bf16.mxu0 0
    %799 = vmatpush1.bf16.msra.mxu0 0
    %800 = vmatprep.subr.bf16.mxu0 0
    %801 = vmatpush1.bf16.msra.mxu0 0
    %802 = vmatprep.subr.bf16.mxu0 0
    %803 = vmatpush1.bf16.msra.mxu0 0
    %804 = vmatprep.subr.bf16.mxu0 0
    %805 = vmatpush1.bf16.msra.mxu0 0
    %806 = vmatprep.subr.bf16.mxu0 0
    %807 = vmatpush1.bf16.msra.mxu0 0
    %808 = vmatprep.mubr.bf16.mxu0 0
    %809 = vmatmul.mubr.bf16.gmra.mrb[0].mxu0 %v774
    %v810 = vpop.f32.mrb[0].mxu0
    %v811 = vadd.f32 %v761, %v810
    %v812 = vpop.f32.mrb[0].mxu0
    %v813 = vpop.f32.mrb[0].mxu0
    %v814 = vadd.f32 %v764, %v813
    %v815 = vpop.f32.mrb[0].mxu0
    %816 = vdwg.mxu0
    %v817 = vld [vmem:[%s3 + $0x3] sm:$0x1]
    %v818 = vlaneseq
    %v819 = vshrl.u32 %v818, 7
    %v820 = vsub.s32 0, %v819
    %v821 = vrot.slane %v817, %v820
    %v822 = vadd.f32 %v811, %v821
    %v823 = vadd.f32 %v814, %v821
    %v824 = vadd.f32 %v207, %v822
    %v825 = vadd.f32 %v208, %v823
    %v826 = vld [vmem:[%s3 + $0x4] sm:$0x1]
    %v827 = vld [vmem:[%s3 + $0x5] sm:$0x1]
    %v828 = vsel %vm169, %v824, 0.0
    %829 = vadd.xlane.f32.xlu0 %v828
    %v830 = vpop.xlane.xlu0 %829
    %v831 = vsel %vm169, %v825, 0.0
    %832 = vadd.xlane.f32.xlu0 %v831
    %v833 = vpop.xlane.xlu0 %832
    %v834 = vmul.f32 %v830, %v176
    %v835 = vmul.f32 %v833, %v176
    %v836 = vsub.f32 %v824, %v834
    %v837 = vsub.f32 %v825, %v835
    %v838 = vmul.f32 %v836, %v836
    %v839 = vmul.f32 %v837, %v837
    %v840 = vsel %vm169, %v838, 0.0
    %841 = vadd.xlane.f32.xlu0 %v840
    %v842 = vpop.xlane.xlu0 %841
    %v843 = vsel %vm169, %v839, 0.0
    %844 = vadd.xlane.f32.xlu0 %v843
    %v845 = vpop.xlane.xlu0 %844
    %v846 = vmul.f32 %v842, %v176
    %v847 = vmul.f32 %v845, %v176
    %v848 = vadd.f32 %v846, 1e-12
    %v849 = vadd.f32 %v847, 1e-12
    %v850 = vrsqrt.pop %v848
    %v851 = vrsqrt.pop %v849
    %v852 = vmul.f32 %v836, %v850
    %v853 = vmul.f32 %v837, %v851
    %v854 = vlaneseq
    %v855 = vshrl.u32 %v854, 7
    %v856 = vsub.s32 0, %v855
    %v857 = vrot.slane %v826, %v856
    %v858 = vmul.f32 %v852, %v857
    %v859 = vmul.f32 %v853, %v857
    %v860 = vlaneseq
    %v861 = vshrl.u32 %v860, 7
    %v862 = vsub.s32 0, %v861
    %v863 = vrot.slane %v827, %v862
    %v864 = vadd.f32 %v858, %v863
    %v865 = vadd.f32 %v859, %v863
    %v866 = vld [vmem:[#allocation2 + $0x20] sm:$0xf]
    %v867 = vld [vmem:[#allocation2 + $0x24] sm:$0xf]
    %v868 = vld [vmem:[#allocation2 + $0x28] sm:$0xf]
    %v869 = vld [vmem:[#allocation2 + $0x2c] sm:$0xf]
    %v870 = vpack.c.bf16 %v865, %v864
    %v871 = vld [vmem:[%s3 + $0x6] sm:$0x1]
    %v872 = vlaneseq
    %v873 = vshrl.u32 %v872, 7
    %v874 = vsub.s32 0, %v873
    %v875 = vrot.slane %v871, %v874
    %v880 = vunpack.c.l.b16 %v866
    %v881 = vunpack.c.l.b16 %v867
    %v882 = vunpack.c.l.b16 %v868
    %v883 = vunpack.c.l.b16 %v869
    %v884 = vpack.c.b16 %v881, %v880
    %v885 = vpack.c.b16 %v883, %v882
    %v889 = vsel %vm169, %v870, 0
    %891 = vmatprep.subr.bf16.mxu0 0
    %892 = vmatpush1.bf16.msra.mxu0 %v884
    %893 = vmatprep.subr.bf16.mxu0 0
    %894 = vmatpush1.bf16.msra.mxu0 %v885
    %895 = vmatprep.subr.bf16.mxu0 0
    %896 = vmatpush1.bf16.msra.mxu0 0
    %897 = vmatprep.subr.bf16.mxu0 0
    %898 = vmatpush1.bf16.msra.mxu0 0
    %899 = vmatprep.subr.bf16.mxu0 0
    %900 = vmatpush1.bf16.msra.mxu0 0
    %901 = vmatprep.subr.bf16.mxu0 0
    %902 = vmatpush1.bf16.msra.mxu0 0
    %903 = vmatprep.subr.bf16.mxu0 0
    %904 = vmatpush1.bf16.msra.mxu0 0
    %905 = vmatprep.subr.bf16.mxu0 0
    %906 = vmatpush1.bf16.msra.mxu0 0
    %907 = vmatprep.subr.bf16.mxu0 0
    %908 = vmatpush1.bf16.msra.mxu0 0
    %909 = vmatprep.subr.bf16.mxu0 0
    %910 = vmatpush1.bf16.msra.mxu0 0
    %911 = vmatprep.subr.bf16.mxu0 0
    %912 = vmatpush1.bf16.msra.mxu0 0
    %913 = vmatprep.subr.bf16.mxu0 0
    %914 = vmatpush1.bf16.msra.mxu0 0
    %915 = vmatprep.subr.bf16.mxu0 0
    %916 = vmatpush1.bf16.msra.mxu0 0
    %917 = vmatprep.subr.bf16.mxu0 0
    %918 = vmatpush1.bf16.msra.mxu0 0
    %919 = vmatprep.subr.bf16.mxu0 0
    %920 = vmatpush1.bf16.msra.mxu0 0
    %921 = vmatprep.subr.bf16.mxu0 0
    %922 = vmatpush1.bf16.msra.mxu0 0
    %923 = vmatprep.mubr.bf16.mxu0 0
    %924 = vmatmul.mubr.bf16.gmra.mrb[0].mxu0 %v889
    %v925 = vpop.f32.mrb[0].mxu0
    %v926 = vadd.f32 %v875, %v925
    %v927 = vpop.f32.mrb[0].mxu0
    %v928 = vpop.f32.mrb[0].mxu0
    %v929 = vadd.f32 %v875, %v928
    %v930 = vpop.f32.mrb[0].mxu0
    %931 = vdwg.mxu0
    %v932 = vmul.f32 %v926, %v926
    %v933 = vmul.f32 %v929, %v929
    %v934 = vmul.f32 %v926, %v932
    %v935 = vmul.f32 %v929, %v933
    %v936 = vmul.f32 %v934, 0.044715
    %v937 = vmul.f32 %v935, 0.044715
    %v938 = vadd.f32 %v926, %v936
    %v939 = vadd.f32 %v929, %v937
    %v940 = vmul.f32 %v938, 0.7978846
    %v941 = vmul.f32 %v939, 0.7978846
    %v942 = vtanh.pop %v940
    %v943 = vtanh.pop %v941
    %v944 = vadd.f32 %v942, 1.0
    %v945 = vadd.f32 %v943, 1.0
    %v946 = vmul.f32 %v944, 0.5
    %v947 = vmul.f32 %v945, 0.5
    %v948 = vmul.f32 %v926, %v946
    %v949 = vmul.f32 %v929, %v947
    %v950 = vld [vmem:[#allocation2 + $0x30] sm:$0xf]
    %v951 = vld [vmem:[#allocation2 + $0x34] sm:$0xf]
    %v952 = vld [vmem:[#allocation2 + $0x38] sm:$0xf]
    %v953 = vld [vmem:[#allocation2 + $0x3c] sm:$0xf]
    %v954 = vld [vmem:[#allocation2 + $0x40] sm:$0xf]
    %v955 = vld [vmem:[#allocation2 + $0x44] sm:$0xf]
    %v956 = vld [vmem:[#allocation2 + $0x48] sm:$0xf]
    %v957 = vld [vmem:[#allocation2 + $0x4c] sm:$0xf]
    %v958 = vpack.c.bf16 %v949, %v948
    %v959 = vld [vmem:[%s3 + $0x7] sm:$0x1]
    %v960 = vlaneseq
    %v961 = vshrl.u32 %v960, 7
    %v962 = vsub.s32 0, %v961
    %v963 = vrot.slane %v959, %v962
    %v972 = vunpack.c.l.b16 %v950
    %v973 = vunpack.c.l.b16 %v951
    %v974 = vunpack.c.l.b16 %v952
    %v975 = vunpack.c.l.b16 %v953
    %v976 = vunpack.c.l.b16 %v954
    %v977 = vunpack.c.l.b16 %v955
    %v978 = vunpack.c.l.b16 %v956
    %v979 = vunpack.c.l.b16 %v957
    %v980 = vpack.c.b16 %v973, %v972
    %v981 = vpack.c.b16 %v975, %v974
    %v982 = vpack.c.b16 %v977, %v976
    %v983 = vpack.c.b16 %v979, %v978
    %vm988 = vcmask 523264
    %v990 = vsel %vm988, %v958, 0
    %992 = vmatprep.subr.bf16.mxu0 0
    %993 = vmatpush1.bf16.msra.mxu0 %v980
    %994 = vmatprep.subr.bf16.mxu0 0
    %995 = vmatpush1.bf16.msra.mxu0 %v981
    %996 = vmatprep.subr.bf16.mxu0 0
    %997 = vmatpush1.bf16.msra.mxu0 %v982
    %998 = vmatprep.subr.bf16.mxu0 0
    %999 = vmatpush1.bf16.msra.mxu0 %v983
    %1000 = vmatprep.subr.bf16.mxu0 0
    %1001 = vmatpush1.bf16.msra.mxu0 0
    %1002 = vmatprep.subr.bf16.mxu0 0
    %1003 = vmatpush1.bf16.msra.mxu0 0
    %1004 = vmatprep.subr.bf16.mxu0 0
    %1005 = vmatpush1.bf16.msra.mxu0 0
    %1006 = vmatprep.subr.bf16.mxu0 0
    %1007 = vmatpush1.bf16.msra.mxu0 0
    %1008 = vmatprep.subr.bf16.mxu0 0
    %1009 = vmatpush1.bf16.msra.mxu0 0
    %1010 = vmatprep.subr.bf16.mxu0 0
    %1011 = vmatpush1.bf16.msra.mxu0 0
    %1012 = vmatprep.subr.bf16.mxu0 0
    %1013 = vmatpush1.bf16.msra.mxu0 0
    %1014 = vmatprep.subr.bf16.mxu0 0
    %1015 = vmatpush1.bf16.msra.mxu0 0
    %1016 = vmatprep.subr.bf16.mxu0 0
    %1017 = vmatpush1.bf16.msra.mxu0 0
    %1018 = vmatprep.subr.bf16.mxu0 0
    %1019 = vmatpush1.bf16.msra.mxu0 0
    %1020 = vmatprep.subr.bf16.mxu0 0
    %1021 = vmatpush1.bf16.msra.mxu0 0
    %1022 = vmatprep.subr.bf16.mxu0 0
    %1023 = vmatpush1.bf16.msra.mxu0 0
    %1024 = vmatprep.mubr.bf16.mxu0 0
    %1025 = vmatmul.mubr.bf16.gmra.mrb[0].mxu0 %v990
    %v1026 = vpop.f32.mrb[0].mxu0
    %v1027 = vadd.f32 %v963, %v1026
    %v1028 = vpop.f32.mrb[0].mxu0
    %v1029 = vpop.f32.mrb[0].mxu0
    %v1030 = vadd.f32 %v963, %v1029
    %v1031 = vpop.f32.mrb[0].mxu0
    %1032 = vdwg.mxu0
    %v1033 = vadd.f32 %v864, %v1027
    %v1034 = vadd.f32 %v865, %v1030
    %v1035 = vld [vmem:[%s3 + $0x8] sm:$0x1]
    %v1036 = vld [vmem:[%s3 + $0x9] sm:$0x1]
    %v1037 = vsel %vm169, %v1033, 0.0
    %1038 = vadd.xlane.f32.xlu0 %v1037
    %v1039 = vpop.xlane.xlu0 %1038
    %v1040 = vsel %vm169, %v1034, 0.0
    %1041 = vadd.xlane.f32.xlu0 %v1040
    %v1042 = vpop.xlane.xlu0 %1041
    %v1043 = vmul.f32 %v1039, %v176
    %v1044 = vmul.f32 %v1042, %v176
    %v1045 = vsub.f32 %v1033, %v1043
    %v1046 = vsub.f32 %v1034, %v1044
    %v1047 = vmul.f32 %v1045, %v1045
    %v1048 = vmul.f32 %v1046, %v1046
    %v1049 = vsel %vm169, %v1047, 0.0
    %1050 = vadd.xlane.f32.xlu0 %v1049
    %v1051 = vpop.xlane.xlu0 %1050
    %v1052 = vsel %vm169, %v1048, 0.0
    %1053 = vadd.xlane.f32.xlu0 %v1052
    %v1054 = vpop.xlane.xlu0 %1053
    %v1055 = vmul.f32 %v1051, %v176
    %v1056 = vmul.f32 %v1054, %v176
    %v1057 = vadd.f32 %v1055, 1e-12
    %v1058 = vadd.f32 %v1056, 1e-12
    %v1059 = vrsqrt.pop %v1057
    %v1060 = vrsqrt.pop %v1058
    %v1061 = vmul.f32 %v1045, %v1059
    %v1062 = vmul.f32 %v1046, %v1060
    %v1063 = vlaneseq
    %v1064 = vshrl.u32 %v1063, 7
    %v1065 = vsub.s32 0, %v1064
    %v1066 = vrot.slane %v1035, %v1065
    %v1067 = vmul.f32 %v1061, %v1066
    %v1068 = vmul.f32 %v1062, %v1066
    %v1069 = vlaneseq
    %v1070 = vshrl.u32 %v1069, 7
    %v1071 = vsub.s32 0, %v1070
    %v1072 = vrot.slane %v1036, %v1071
    %v1073 = vadd.f32 %v1067, %v1072
    %v1074 = vadd.f32 %v1068, %v1072
    %v1075 = vld [vmem:[#allocation2 + $0x50] sm:$0xf]
    %v1076 = vld [vmem:[#allocation2 + $0x54] sm:$0xf]
    %v1077 = vld [vmem:[#allocation2 + $0x58] sm:$0xf]
    %v1078 = vld [vmem:[#allocation2 + $0x5c] sm:$0xf]
    %v1079 = vpack.c.bf16 %v1074, %v1073
    %v1080 = vld [vmem:[%s3 + $0xa] sm:$0x1]
    %v1081 = vlaneseq
    %v1082 = vshrl.u32 %v1081, 7
    %v1083 = vsub.s32 0, %v1082
    %v1084 = vrot.slane %v1080, %v1083
    %v1089 = vunpack.c.l.b16 %v1075
    %v1090 = vunpack.c.l.b16 %v1076
    %v1091 = vunpack.c.l.b16 %v1077
    %v1092 = vunpack.c.l.b16 %v1078
    %v1093 = vpack.c.b16 %v1090, %v1089
    %v1094 = vpack.c.b16 %v1092, %v1091
    %v1098 = vsel %vm169, %v1079, 0
    %1100 = vmatprep.subr.bf16.mxu0 0
    %1101 = vmatpush1.bf16.msra.mxu0 %v1093
    %1102 = vmatprep.subr.bf16.mxu0 0
    %1103 = vmatpush1.bf16.msra.mxu0 %v1094
    %1104 = vmatprep.subr.bf16.mxu0 0
    %1105 = vmatpush1.bf16.msra.mxu0 0
    %1106 = vmatprep.subr.bf16.mxu0 0
    %1107 = vmatpush1.bf16.msra.mxu0 0
    %1108 = vmatprep.subr.bf16.mxu0 0
    %1109 = vmatpush1.bf16.msra.mxu0 0
    %1110 = vmatprep.subr.bf16.mxu0 0
    %1111 = vmatpush1.bf16.msra.mxu0 0
    %1112 = vmatprep.subr.bf16.mxu0 0
    %1113 = vmatpush1.bf16.msra.mxu0 0
    %1114 = vmatprep.subr.bf16.mxu0 0
    %1115 = vmatpush1.bf16.msra.mxu0 0
    %1116 = vmatprep.subr.bf16.mxu0 0
    %1117 = vmatpush1.bf16.msra.mxu0 0
    %1118 = vmatprep.subr.bf16.mxu0 0
    %1119 = vmatpush1.bf16.msra.mxu0 0
    %1120 = vmatprep.subr.bf16.mxu0 0
    %1121 = vmatpush1.bf16.msra.mxu0 0
    %1122 = vmatprep.subr.bf16.mxu0 0
    %1123 = vmatpush1.bf16.msra.mxu0 0
    %1124 = vmatprep.subr.bf16.mxu0 0
    %1125 = vmatpush1.bf16.msra.mxu0 0
    %1126 = vmatprep.subr.bf16.mxu0 0
    %1127 = vmatpush1.bf16.msra.mxu0 0
    %1128 = vmatprep.subr.bf16.mxu0 0
    %1129 = vmatpush1.bf16.msra.mxu0 0
    %1130 = vmatprep.subr.bf16.mxu0 0
    %1131 = vmatpush1.bf16.msra.mxu0 0
    %1132 = vmatprep.mubr.bf16.mxu0 0
    %1133 = vmatmul.mubr.bf16.gmra.mrb[0].mxu0 %v1098
    %v1134 = vpop.f32.mrb[0].mxu0
    %v1135 = vadd.f32 %v1084, %v1134
    %v1136 = vpop.f32.mrb[0].mxu0
    %v1137 = vpop.f32.mrb[0].mxu0
    %v1138 = vadd.f32 %v1084, %v1137
    %v1139 = vpop.f32.mrb[0].mxu0
    %1140 = vdwg.mxu0
    %1143 = vrot.lane.b32.xlu0 %v1135, 96
    %v1144 = vpop.permute.xlu0 %1143
    %1145 = vrot.lane.b32.xlu0 %v1138, 96
    %v1146 = vpop.permute.xlu0 %1145
    %v1147 = vsel %vm310, %v1135, 0
    %v1149 = vsel %vm310, %v1138, 0
    %v1151 = vsel %vm310, %v1144, 0
    %v1153 = vsel %vm310, %v1146, 0
    %1155 = vmatprep.subr.mxu0 0.0
    %1156 = vmatpush1.xpose.msra.mxu0 %v1151
    %1157 = vmatprep.subr.mxu0 0.0
    %1158 = vmatpush1.xpose.msra.mxu0 %v1153
    %1159 = vmatprep.subr.mxu0 0.0
    %1160 = vmatpush1.xpose.msra.mxu0 0.0
    %1161 = vmatprep.subr.mxu0 0.0
    %1162 = vmatpush1.xpose.msra.mxu0 0.0
    %1163 = vmatprep.subr.mxu0 0.0
    %1164 = vmatpush1.xpose.msra.mxu0 0.0
    %1165 = vmatprep.subr.mxu0 0.0
    %1166 = vmatpush1.xpose.msra.mxu0 0.0
    %1167 = vmatprep.subr.mxu0 0.0
    %1168 = vmatpush1.xpose.msra.mxu0 0.0
    %1169 = vmatprep.subr.mxu0 0.0
    %1170 = vmatpush1.xpose.msra.mxu0 0.0
    %1171 = vmatprep.subr.mxu0 0.0
    %1172 = vmatpush1.xpose.msra.mxu0 0.0
    %1173 = vmatprep.subr.mxu0 0.0
    %1174 = vmatpush1.xpose.msra.mxu0 0.0
    %1175 = vmatprep.subr.mxu0 0.0
    %1176 = vmatpush1.xpose.msra.mxu0 0.0
    %1177 = vmatprep.subr.mxu0 0.0
    %1178 = vmatpush1.xpose.msra.mxu0 0.0
    %1179 = vmatprep.subr.mxu0 0.0
    %1180 = vmatpush1.xpose.msra.mxu0 0.0
    %1181 = vmatprep.subr.mxu0 0.0
    %1182 = vmatpush1.xpose.msra.mxu0 0.0
    %1183 = vmatprep.subr.mxu0 0.0
    %1184 = vmatpush1.xpose.msra.mxu0 0.0
    %1185 = vmatprep.subr.mxu0 0.0
    %1186 = vmatpush1.xpose.msra.mxu0 0.0
    %1187 = vmatprep.subr.mxu0 0.0
    %1188 = vmatpush1.xpose.msra.mxu0 0.0
    %1189 = vmatprep.subr.mxu0 0.0
    %1190 = vmatpush1.xpose.msra.mxu0 0.0
    %1191 = vmatprep.subr.mxu0 0.0
    %1192 = vmatpush1.xpose.msra.mxu0 0.0
    %1193 = vmatprep.subr.mxu0 0.0
    %1194 = vmatpush1.xpose.msra.mxu0 0.0
    %1195 = vmatprep.subr.mxu0 0.0
    %1196 = vmatpush1.xpose.msra.mxu0 0.0
    %1197 = vmatprep.subr.mxu0 0.0
    %1198 = vmatpush1.xpose.msra.mxu0 0.0
    %1199 = vmatprep.subr.mxu0 0.0
    %1200 = vmatpush1.xpose.msra.mxu0 0.0
    %1201 = vmatprep.subr.mxu0 0.0
    %1202 = vmatpush1.xpose.msra.mxu0 0.0
    %1203 = vmatprep.subr.mxu0 0.0
    %1204 = vmatpush1.xpose.msra.mxu0 0.0
    %1205 = vmatprep.subr.mxu0 0.0
    %1206 = vmatpush1.xpose.msra.mxu0 0.0
    %1207 = vmatprep.subr.mxu0 0.0
    %1208 = vmatpush1.xpose.msra.mxu0 0.0
    %1209 = vmatprep.subr.mxu0 0.0
    %1210 = vmatpush1.xpose.msra.mxu0 0.0
    %1211 = vmatprep.subr.mxu0 0.0
    %1212 = vmatpush1.xpose.msra.mxu0 0.0
    %1213 = vmatprep.subr.mxu0 0.0
    %1214 = vmatpush1.xpose.msra.mxu0 0.0
    %1215 = vmatprep.subr.mxu0 0.0
    %1216 = vmatpush1.xpose.msra.mxu0 0.0
    %1217 = vmatprep.subr.mxu0 0.0
    %1218 = vmatpush1.xpose.msra.mxu0 0.0
    %1219 = vmatprep.mubr.f32.mxu0 0.0
    %1220 = vmatmul.mubr.f32.gmra.mrb[0].mxu0 %v1147
    %v1221 = vpop.f32.mrb[0].mxu0
    %v1222 = vadd.f32 0.0, %v1221
    %v1223 = vpop.f32.mrb[0].mxu0
    %1224 = vmatprep.mubr.f32.mxu0 0.0
    %1225 = vmatmul.mubr.f32.gmra.mrb[0].mxu0 %v1149
    %v1226 = vpop.f32.mrb[0].mxu0
    %v1227 = vadd.f32 0.0, %v1226
    %v1228 = vpop.f32.mrb[0].mxu0
    %1229 = vdwg.mxu0
    %v1230 = vmul.f32 %v1222, 0.25
    %v1231 = vmul.f32 %v1227, 0.25
    %v1232 = vadd.f32 %v1230, %v236
    %v1233 = vadd.f32 %v1231, %v237
    %v1234 = vsel %vm310, %v1232, -inf
    %1235 = vmax.xlane.f32.xlu0 %v1234
    %v1236 = vpop.xlane.xlu0 %1235
    %v1237 = vsel %vm310, %v1233, -inf
    %1238 = vmax.xlane.f32.xlu0 %v1237
    %v1239 = vpop.xlane.xlu0 %1238
    %v1240 = vsub.f32 %v1232, %v1236
    %v1241 = vsub.f32 %v1233, %v1239
    %v1242 = vmul.f32 %v1240, 1.442695
    %v1243 = vpow.pop %v1242
    %v1244 = vmul.f32 %v1241, 1.442695
    %v1245 = vpow.pop %v1244
    %v1246 = vsel %vm310, %v1243, 0.0
    %1247 = vadd.xlane.f32.xlu0 %v1246
    %v1248 = vpop.xlane.xlu0 %1247
    %v1249 = vsel %vm310, %v1245, 0.0
    %1250 = vadd.xlane.f32.xlu0 %v1249
    %v1251 = vpop.xlane.xlu0 %1250
    %v1252 = vrcp.pop %v1248
    %v1253 = vrcp.pop %v1251
    %v1254 = vmul.f32 %v1243, %v1252
    %v1255 = vmul.f32 %v1245, %v1253
    %1256 = vrot.lane.b32.xlu0 %v1135, 64
    %v1257 = vpop.permute.xlu0 %1256
    %1258 = vrot.lane.b32.xlu0 %v1138, 64
    %v1259 = vpop.permute.xlu0 %1258
    %v1263 = vsel %vm310, %v1254, 0
    %v1266 = vsel %vm310, %v1255, 0
    %1268 = vmatprep.subr.mxu0 0.0
    %1269 = vmatpush1.msra.mxu0 %v1257
    %1270 = vmatprep.subr.mxu0 0.0
    %1271 = vmatpush1.msra.mxu0 %v1259
    %1272 = vmatprep.subr.mxu0 0.0
    %1273 = vmatpush1.msra.mxu0 0.0
    %1274 = vmatprep.subr.mxu0 0.0
    %1275 = vmatpush1.msra.mxu0 0.0
    %1276 = vmatprep.subr.mxu0 0.0
    %1277 = vmatpush1.msra.mxu0 0.0
    %1278 = vmatprep.subr.mxu0 0.0
    %1279 = vmatpush1.msra.mxu0 0.0
    %1280 = vmatprep.subr.mxu0 0.0
    %1281 = vmatpush1.msra.mxu0 0.0
    %1282 = vmatprep.subr.mxu0 0.0
    %1283 = vmatpush1.msra.mxu0 0.0
    %1284 = vmatprep.subr.mxu0 0.0
    %1285 = vmatpush1.msra.mxu0 0.0
    %1286 = vmatprep.subr.mxu0 0.0
    %1287 = vmatpush1.msra.mxu0 0.0
    %1288 = vmatprep.subr.mxu0 0.0
    %1289 = vmatpush1.msra.mxu0 0.0
    %1290 = vmatprep.subr.mxu0 0.0
    %1291 = vmatpush1.msra.mxu0 0.0
    %1292 = vmatprep.subr.mxu0 0.0
    %1293 = vmatpush1.msra.mxu0 0.0
    %1294 = vmatprep.subr.mxu0 0.0
    %1295 = vmatpush1.msra.mxu0 0.0
    %1296 = vmatprep.subr.mxu0 0.0
    %1297 = vmatpush1.msra.mxu0 0.0
    %1298 = vmatprep.subr.mxu0 0.0
    %1299 = vmatpush1.msra.mxu0 0.0
    %1300 = vmatprep.subr.mxu0 0.0
    %1301 = vmatpush1.msra.mxu0 0.0
    %1302 = vmatprep.subr.mxu0 0.0
    %1303 = vmatpush1.msra.mxu0 0.0
    %1304 = vmatprep.subr.mxu0 0.0
    %1305 = vmatpush1.msra.mxu0 0.0
    %1306 = vmatprep.subr.mxu0 0.0
    %1307 = vmatpush1.msra.mxu0 0.0
    %1308 = vmatprep.subr.mxu0 0.0
    %1309 = vmatpush1.msra.mxu0 0.0
    %1310 = vmatprep.subr.mxu0 0.0
    %1311 = vmatpush1.msra.mxu0 0.0
    %1312 = vmatprep.subr.mxu0 0.0
    %1313 = vmatpush1.msra.mxu0 0.0
    %1314 = vmatprep.subr.mxu0 0.0
    %1315 = vmatpush1.msra.mxu0 0.0
    %1316 = vmatprep.subr.mxu0 0.0
    %1317 = vmatpush1.msra.mxu0 0.0
    %1318 = vmatprep.subr.mxu0 0.0
    %1319 = vmatpush1.msra.mxu0 0.0
    %1320 = vmatprep.subr.mxu0 0.0
    %1321 = vmatpush1.msra.mxu0 0.0
    %1322 = vmatprep.subr.mxu0 0.0
    %1323 = vmatpush1.msra.mxu0 0.0
    %1324 = vmatprep.subr.mxu0 0.0
    %1325 = vmatpush1.msra.mxu0 0.0
    %1326 = vmatprep.subr.mxu0 0.0
    %1327 = vmatpush1.msra.mxu0 0.0
    %1328 = vmatprep.subr.mxu0 0.0
    %1329 = vmatpush1.msra.mxu0 0.0
    %1330 = vmatprep.subr.mxu0 0.0
    %1331 = vmatpush1.msra.mxu0 0.0
    %1332 = vmatprep.mubr.f32.mxu0 0.0
    %1333 = vmatmul.mubr.f32.gmra.mrb[0].mxu0 %v1263
    %v1334 = vpop.f32.mrb[0].mxu0
    %v1335 = vadd.f32 0.0, %v1334
    %v1336 = vpop.f32.mrb[0].mxu0
    %1337 = vmatprep.mubr.f32.mxu0 0.0
    %1338 = vmatmul.mubr.f32.gmra.mrb[0].mxu0 %v1266
    %v1339 = vpop.f32.mrb[0].mxu0
    %v1340 = vadd.f32 0.0, %v1339
    %v1341 = vpop.f32.mrb[0].mxu0
    %1342 = vdwg.mxu0
    %v1343 = vld [vmem:[#allocation2 + $0x60] sm:$0xf]
    %v1344 = vld [vmem:[#allocation2 + $0x64] sm:$0xf]
    %v1345 = vpack.c.bf16 %v1340, %v1335
    %1346 = vrot.lane.b32.xlu0 %v1135, 112
    %v1347 = vpop.permute.xlu0 %1346
    %1348 = vrot.lane.b32.xlu0 %v1138, 112
    %v1349 = vpop.permute.xlu0 %1348
    %1350 = vrot.lane.b32.xlu0 %v1135, 80
    %v1351 = vpop.permute.xlu0 %1350
    %1352 = vrot.lane.b32.xlu0 %v1138, 80
    %v1353 = vpop.permute.xlu0 %1352
    %v1354 = vsel %vm310, %v1347, 0
    %v1356 = vsel %vm310, %v1349, 0
    %v1358 = vsel %vm310, %v1351, 0
    %v1360 = vsel %vm310, %v1353, 0
    %1362 = vmatprep.subr.mxu0 0.0
    %1363 = vmatpush1.xpose.msra.mxu0 %v1358
    %1364 = vmatprep.subr.mxu0 0.0
    %1365 = vmatpush1.xpose.msra.mxu0 %v1360
    %1366 = vmatprep.subr.mxu0 0.0
    %1367 = vmatpush1.xpose.msra.mxu0 0.0
    %1368 = vmatprep.subr.mxu0 0.0
    %1369 = vmatpush1.xpose.msra.mxu0 0.0
    %1370 = vmatprep.subr.mxu0 0.0
    %1371 = vmatpush1.xpose.msra.mxu0 0.0
    %1372 = vmatprep.subr.mxu0 0.0
    %1373 = vmatpush1.xpose.msra.mxu0 0.0
    %1374 = vmatprep.subr.mxu0 0.0
    %1375 = vmatpush1.xpose.msra.mxu0 0.0
    %1376 = vmatprep.subr.mxu0 0.0
    %1377 = vmatpush1.xpose.msra.mxu0 0.0
    %1378 = vmatprep.subr.mxu0 0.0
    %1379 = vmatpush1.xpose.msra.mxu0 0.0
    %1380 = vmatprep.subr.mxu0 0.0
    %1381 = vmatpush1.xpose.msra.mxu0 0.0
    %1382 = vmatprep.subr.mxu0 0.0
    %1383 = vmatpush1.xpose.msra.mxu0 0.0
    %1384 = vmatprep.subr.mxu0 0.0
    %1385 = vmatpush1.xpose.msra.mxu0 0.0
    %1386 = vmatprep.subr.mxu0 0.0
    %1387 = vmatpush1.xpose.msra.mxu0 0.0
    %1388 = vmatprep.subr.mxu0 0.0
    %1389 = vmatpush1.xpose.msra.mxu0 0.0
    %1390 = vmatprep.subr.mxu0 0.0
    %1391 = vmatpush1.xpose.msra.mxu0 0.0
    %1392 = vmatprep.subr.mxu0 0.0
    %1393 = vmatpush1.xpose.msra.mxu0 0.0
    %1394 = vmatprep.subr.mxu0 0.0
    %1395 = vmatpush1.xpose.msra.mxu0 0.0
    %1396 = vmatprep.subr.mxu0 0.0
    %1397 = vmatpush1.xpose.msra.mxu0 0.0
    %1398 = vmatprep.subr.mxu0 0.0
    %1399 = vmatpush1.xpose.msra.mxu0 0.0
    %1400 = vmatprep.subr.mxu0 0.0
    %1401 = vmatpush1.xpose.msra.mxu0 0.0
    %1402 = vmatprep.subr.mxu0 0.0
    %1403 = vmatpush1.xpose.msra.mxu0 0.0
    %1404 = vmatprep.subr.mxu0 0.0
    %1405 = vmatpush1.xpose.msra.mxu0 0.0
    %1406 = vmatprep.subr.mxu0 0.0
    %1407 = vmatpush1.xpose.msra.mxu0 0.0
    %1408 = vmatprep.subr.mxu0 0.0
    %1409 = vmatpush1.xpose.msra.mxu0 0.0
    %1410 = vmatprep.subr.mxu0 0.0
    %1411 = vmatpush1.xpose.msra.mxu0 0.0
    %1412 = vmatprep.subr.mxu0 0.0
    %1413 = vmatpush1.xpose.msra.mxu0 0.0
    %1414 = vmatprep.subr.mxu0 0.0
    %1415 = vmatpush1.xpose.msra.mxu0 0.0
    %1416 = vmatprep.subr.mxu0 0.0
    %1417 = vmatpush1.xpose.msra.mxu0 0.0
    %1418 = vmatprep.subr.mxu0 0.0
    %1419 = vmatpush1.xpose.msra.mxu0 0.0
    %1420 = vmatprep.subr.mxu0 0.0
    %1421 = vmatpush1.xpose.msra.mxu0 0.0
    %1422 = vmatprep.subr.mxu0 0.0
    %1423 = vmatpush1.xpose.msra.mxu0 0.0
    %1424 = vmatprep.subr.mxu0 0.0
    %1425 = vmatpush1.xpose.msra.mxu0 0.0
    %1426 = vmatprep.mubr.f32.mxu0 0.0
    %1427 = vmatmul.mubr.f32.gmra.mrb[0].mxu0 %v1354
    %v1428 = vpop.f32.mrb[0].mxu0
    %v1429 = vadd.f32 0.0, %v1428
    %v1430 = vpop.f32.mrb[0].mxu0
    %1431 = vmatprep.mubr.f32.mxu0 0.0
    %1432 = vmatmul.mubr.f32.gmra.mrb[0].mxu0 %v1356
    %v1433 = vpop.f32.mrb[0].mxu0
    %v1434 = vadd.f32 0.0, %v1433
    %v1435 = vpop.f32.mrb[0].mxu0
    %1436 = vdwg.mxu0
    %v1437 = vmul.f32 %v1429, 0.25
    %v1438 = vmul.f32 %v1434, 0.25
    %v1439 = vadd.f32 %v1437, %v236
    %v1440 = vadd.f32 %v1438, %v237
    %v1441 = vsel %vm310, %v1439, -inf
    %1442 = vmax.xlane.f32.xlu0 %v1441
    %v1443 = vpop.xlane.xlu0 %1442
    %v1444 = vsel %vm310, %v1440, -inf
    %1445 = vmax.xlane.f32.xlu0 %v1444
    %v1446 = vpop.xlane.xlu0 %1445
    %v1447 = vsub.f32 %v1439, %v1443
    %v1448 = vsub.f32 %v1440, %v1446
    %v1449 = vmul.f32 %v1447, 1.442695
    %v1450 = vpow.pop %v1449
    %v1451 = vmul.f32 %v1448, 1.442695
    %v1452 = vpow.pop %v1451
    %v1453 = vsel %vm310, %v1450, 0.0
    %1454 = vadd.xlane.f32.xlu0 %v1453
    %v1455 = vpop.xlane.xlu0 %1454
    %v1456 = vsel %vm310, %v1452, 0.0
    %1457 = vadd.xlane.f32.xlu0 %v1456
    %v1458 = vpop.xlane.xlu0 %1457
    %v1459 = vrcp.pop %v1455
    %v1460 = vrcp.pop %v1458
    %v1461 = vmul.f32 %v1450, %v1459
    %v1462 = vmul.f32 %v1452, %v1460
    %1463 = vrot.lane.b32.xlu0 %v1135, 48
    %v1464 = vpop.permute.xlu0 %1463
    %1465 = vrot.lane.b32.xlu0 %v1138, 48
    %v1466 = vpop.permute.xlu0 %1465
    %v1470 = vsel %vm310, %v1461, 0
    %v1473 = vsel %vm310, %v1462, 0
    %1475 = vmatprep.subr.mxu0 0.0
    %1476 = vmatpush1.msra.mxu0 %v1464
    %1477 = vmatprep.subr.mxu0 0.0
    %1478 = vmatpush1.msra.mxu0 %v1466
    %1479 = vmatprep.subr.mxu0 0.0
    %1480 = vmatpush1.msra.mxu0 0.0
    %1481 = vmatprep.subr.mxu0 0.0
    %1482 = vmatpush1.msra.mxu0 0.0
    %1483 = vmatprep.subr.mxu0 0.0
    %1484 = vmatpush1.msra.mxu0 0.0
    %1485 = vmatprep.subr.mxu0 0.0
    %1486 = vmatpush1.msra.mxu0 0.0
    %1487 = vmatprep.subr.mxu0 0.0
    %1488 = vmatpush1.msra.mxu0 0.0
    %1489 = vmatprep.subr.mxu0 0.0
    %1490 = vmatpush1.msra.mxu0 0.0
    %1491 = vmatprep.subr.mxu0 0.0
    %1492 = vmatpush1.msra.mxu0 0.0
    %1493 = vmatprep.subr.mxu0 0.0
    %1494 = vmatpush1.msra.mxu0 0.0
    %1495 = vmatprep.subr.mxu0 0.0
    %1496 = vmatpush1.msra.mxu0 0.0
    %1497 = vmatprep.subr.mxu0 0.0
    %1498 = vmatpush1.msra.mxu0 0.0
    %1499 = vmatprep.subr.mxu0 0.0
    %1500 = vmatpush1.msra.mxu0 0.0
    %1501 = vmatprep.subr.mxu0 0.0
    %1502 = vmatpush1.msra.mxu0 0.0
    %1503 = vmatprep.subr.mxu0 0.0
    %1504 = vmatpush1.msra.mxu0 0.0
    %1505 = vmatprep.subr.mxu0 0.0
    %1506 = vmatpush1.msra.mxu0 0.0
    %1507 = vmatprep.subr.mxu0 0.0
    %1508 = vmatpush1.msra.mxu0 0.0
    %1509 = vmatprep.subr.mxu0 0.0
    %1510 = vmatpush1.msra.mxu0 0.0
    %1511 = vmatprep.subr.mxu0 0.0
    %1512 = vmatpush1.msra.mxu0 0.0
    %1513 = vmatprep.subr.mxu0 0.0
    %1514 = vmatpush1.msra.mxu0 0.0
    %1515 = vmatprep.subr.mxu0 0.0
    %1516 = vmatpush1.msra.mxu0 0.0
    %1517 = vmatprep.subr.mxu0 0.0
    %1518 = vmatpush1.msra.mxu0 0.0
    %1519 = vmatprep.subr.mxu0 0.0
    %1520 = vmatpush1.msra.mxu0 0.0
    %1521 = vmatprep.subr.mxu0 0.0
    %1522 = vmatpush1.msra.mxu0 0.0
    %1523 = vmatprep.subr.mxu0 0.0
    %1524 = vmatpush1.msra.mxu0 0.0
    %1525 = vmatprep.subr.mxu0 0.0
    %1526 = vmatpush1.msra.mxu0 0.0
    %1527 = vmatprep.subr.mxu0 0.0
    %1528 = vmatpush1.msra.mxu0 0.0
    %1529 = vmatprep.subr.mxu0 0.0
    %1530 = vmatpush1.msra.mxu0 0.0
    %1531 = vmatprep.subr.mxu0 0.0
    %1532 = vmatpush1.msra.mxu0 0.0
    %1533 = vmatprep.subr.mxu0 0.0
    %1534 = vmatpush1.msra.mxu0 0.0
    %1535 = vmatprep.subr.mxu0 0.0
    %1536 = vmatpush1.msra.mxu0 0.0
    %1537 = vmatprep.subr.mxu0 0.0
    %1538 = vmatpush1.msra.mxu0 0.0
    %1539 = vmatprep.mubr.f32.mxu0 0.0
    %1540 = vmatmul.mubr.f32.gmra.mrb[0].mxu0 %v1470
    %v1541 = vpop.f32.mrb[0].mxu0
    %v1542 = vadd.f32 0.0, %v1541
    %v1543 = vpop.f32.mrb[0].mxu0
    %1544 = vmatprep.mubr.f32.mxu0 0.0
    %1545 = vmatmul.mubr.f32.gmra.mrb[0].mxu0 %v1473
    %v1546 = vpop.f32.mrb[0].mxu0
    %v1547 = vadd.f32 0.0, %v1546
    %v1548 = vpop.f32.mrb[0].mxu0
    %1549 = vdwg.mxu0
    %v1550 = vld [vmem:[#allocation2 + $0x68] sm:$0xf]
    %v1551 = vld [vmem:[#allocation2 + $0x6c] sm:$0xf]
    %v1552 = vpack.c.bf16 %v1547, %v1542
    %v1555 = vunpack.c.l.b16 %v1550
    %v1556 = vunpack.c.l.b16 %v1551
    %v1557 = vpack.c.b16 %v1556, %v1555
    %v1560 = vsel %vm310, %v1552, 0
    %1562 = vmatprep.subr.bf16.mxu0 0
    %1563 = vmatpush1.bf16.msra.mxu0 %v1557
    %1564 = vmatprep.subr.bf16.mxu0 0
    %1565 = vmatpush1.bf16.msra.mxu0 0
    %1566 = vmatprep.subr.bf16.mxu0 0
    %1567 = vmatpush1.bf16.msra.mxu0 0
    %1568 = vmatprep.subr.bf16.mxu0 0
    %1569 = vmatpush1.bf16.msra.mxu0 0
    %1570 = vmatprep.subr.bf16.mxu0 0
    %1571 = vmatpush1.bf16.msra.mxu0 0
    %1572 = vmatprep.subr.bf16.mxu0 0
    %1573 = vmatpush1.bf16.msra.mxu0 0
    %1574 = vmatprep.subr.bf16.mxu0 0
    %1575 = vmatpush1.bf16.msra.mxu0 0
    %1576 = vmatprep.subr.bf16.mxu0 0
    %1577 = vmatpush1.bf16.msra.mxu0 0
    %1578 = vmatprep.subr.bf16.mxu0 0
    %1579 = vmatpush1.bf16.msra.mxu0 0
    %1580 = vmatprep.subr.bf16.mxu0 0
    %1581 = vmatpush1.bf16.msra.mxu0 0
    %1582 = vmatprep.subr.bf16.mxu0 0
    %1583 = vmatpush1.bf16.msra.mxu0 0
    %1584 = vmatprep.subr.bf16.mxu0 0
    %1585 = vmatpush1.bf16.msra.mxu0 0
    %1586 = vmatprep.subr.bf16.mxu0 0
    %1587 = vmatpush1.bf16.msra.mxu0 0
    %1588 = vmatprep.subr.bf16.mxu0 0
    %1589 = vmatpush1.bf16.msra.mxu0 0
    %1590 = vmatprep.subr.bf16.mxu0 0
    %1591 = vmatpush1.bf16.msra.mxu0 0
    %1592 = vmatprep.subr.bf16.mxu0 0
    %1593 = vmatpush1.bf16.msra.mxu0 0
    %1594 = vmatprep.mubr.bf16.mxu0 0
    %1595 = vmatmul.mubr.bf16.gmra.mrb[0].mxu0 %v1560
    %v1596 = vpop.f32.mrb[0].mxu0
    %v1597 = vadd.f32 0.0, %v1596
    %v1598 = vpop.f32.mrb[0].mxu0
    %v1599 = vpop.f32.mrb[0].mxu0
    %v1600 = vadd.f32 0.0, %v1599
    %v1601 = vpop.f32.mrb[0].mxu0
    %1602 = vdwg.mxu0
    %v1605 = vunpack.c.l.b16 %v1343
    %v1606 = vunpack.c.l.b16 %v1344
    %v1607 = vpack.c.b16 %v1606, %v1605
    %v1610 = vsel %vm310, %v1345, 0
    %1612 = vmatprep.subr.bf16.mxu0 0
    %1613 = vmatpush1.bf16.msra.mxu0 %v1607
    %1614 = vmatprep.subr.bf16.mxu0 0
    %1615 = vmatpush1.bf16.msra.mxu0 0
    %1616 = vmatprep.subr.bf16.mxu0 0
    %1617 = vmatpush1.bf16.msra.mxu0 0
    %1618 = vmatprep.subr.bf16.mxu0 0
    %1619 = vmatpush1.bf16.msra.mxu0 0
    %1620 = vmatprep.subr.bf16.mxu0 0
    %1621 = vmatpush1.bf16.msra.mxu0 0
    %1622 = vmatprep.subr.bf16.mxu0 0
    %1623 = vmatpush1.bf16.msra.mxu0 0
    %1624 = vmatprep.subr.bf16.mxu0 0
    %1625 = vmatpush1.bf16.msra.mxu0 0
    %1626 = vmatprep.subr.bf16.mxu0 0
    %1627 = vmatpush1.bf16.msra.mxu0 0
    %1628 = vmatprep.subr.bf16.mxu0 0
    %1629 = vmatpush1.bf16.msra.mxu0 0
    %1630 = vmatprep.subr.bf16.mxu0 0
    %1631 = vmatpush1.bf16.msra.mxu0 0
    %1632 = vmatprep.subr.bf16.mxu0 0
    %1633 = vmatpush1.bf16.msra.mxu0 0
    %1634 = vmatprep.subr.bf16.mxu0 0
    %1635 = vmatpush1.bf16.msra.mxu0 0
    %1636 = vmatprep.subr.bf16.mxu0 0
    %1637 = vmatpush1.bf16.msra.mxu0 0
    %1638 = vmatprep.subr.bf16.mxu0 0
    %1639 = vmatpush1.bf16.msra.mxu0 0
    %1640 = vmatprep.subr.bf16.mxu0 0
    %1641 = vmatpush1.bf16.msra.mxu0 0
    %1642 = vmatprep.subr.bf16.mxu0 0
    %1643 = vmatpush1.bf16.msra.mxu0 0
    %1644 = vmatprep.mubr.bf16.mxu0 0
    %1645 = vmatmul.mubr.bf16.gmra.mrb[0].mxu0 %v1610
    %v1646 = vpop.f32.mrb[0].mxu0
    %v1647 = vadd.f32 %v1597, %v1646
    %v1648 = vpop.f32.mrb[0].mxu0
    %v1649 = vpop.f32.mrb[0].mxu0
    %v1650 = vadd.f32 %v1600, %v1649
    %v1651 = vpop.f32.mrb[0].mxu0
    %1652 = vdwg.mxu0
    %v1653 = vld [vmem:[%s3 + $0xb] sm:$0x1]
    %v1654 = vlaneseq
    %v1655 = vshrl.u32 %v1654, 7
    %v1656 = vsub.s32 0, %v1655
    %v1657 = vrot.slane %v1653, %v1656
    %v1658 = vadd.f32 %v1647, %v1657
    %v1659 = vadd.f32 %v1650, %v1657
    %v1660 = vadd.f32 %v1073, %v1658
    %v1661 = vadd.f32 %v1074, %v1659
    %v1662 = vld [vmem:[%s3 + $0xc] sm:$0x1]
    %v1663 = vld [vmem:[%s3 + $0xd] sm:$0x1]
    %v1664 = vsel %vm169, %v1660, 0.0
    %1665 = vadd.xlane.f32.xlu0 %v1664
    %v1666 = vpop.xlane.xlu0 %1665
    %v1667 = vsel %vm169, %v1661, 0.0
    %1668 = vadd.xlane.f32.xlu0 %v1667
    %v1669 = vpop.xlane.xlu0 %1668
    %v1670 = vmul.f32 %v1666, %v176
    %v1671 = vmul.f32 %v1669, %v176
    %v1672 = vsub.f32 %v1660, %v1670
    %v1673 = vsub.f32 %v1661, %v1671
    %v1674 = vmul.f32 %v1672, %v1672
    %v1675 = vmul.f32 %v1673, %v1673
    %v1676 = vsel %vm169, %v1674, 0.0
    %1677 = vadd.xlane.f32.xlu0 %v1676
    %v1678 = vpop.xlane.xlu0 %1677
    %v1679 = vsel %vm169, %v1675, 0.0
    %1680 = vadd.xlane.f32.xlu0 %v1679
    %v1681 = vpop.xlane.xlu0 %1680
    %v1682 = vmul.f32 %v1678, %v176
    %v1683 = vmul.f32 %v1681, %v176
    %v1684 = vadd.f32 %v1682, 1e-12
    %v1685 = vadd.f32 %v1683, 1e-12
    %v1686 = vrsqrt.pop %v1684
    %v1687 = vrsqrt.pop %v1685
    %v1688 = vmul.f32 %v1672, %v1686
    %v1689 = vmul.f32 %v1673, %v1687
    %v1690 = vlaneseq
    %v1691 = vshrl.u32 %v1690, 7
    %v1692 = vsub.s32 0, %v1691
    %v1693 = vrot.slane %v1662, %v1692
    %v1694 = vmul.f32 %v1688, %v1693
    %v1695 = vmul.f32 %v1689, %v1693
    %v1696 = vlaneseq
    %v1697 = vshrl.u32 %v1696, 7
    %v1698 = vsub.s32 0, %v1697
    %v1699 = vrot.slane %v1663, %v1698
    %v1700 = vadd.f32 %v1694, %v1699
    %v1701 = vadd.f32 %v1695, %v1699
    %v1702 = vld [vmem:[#allocation2 + $0x70] sm:$0xf]
    %v1703 = vld [vmem:[#allocation2 + $0x74] sm:$0xf]
    %v1704 = vld [vmem:[#allocation2 + $0x78] sm:$0xf]
    %v1705 = vld [vmem:[#allocation2 + $0x7c] sm:$0xf]
    %v1706 = vpack.c.bf16 %v1701, %v1700
    %v1707 = vld [vmem:[%s3 + $0xe] sm:$0x1]
    %v1708 = vlaneseq
    %v1709 = vshrl.u32 %v1708, 7
    %v1710 = vsub.s32 0, %v1709
    %v1711 = vrot.slane %v1707, %v1710
    %v1716 = vunpack.c.l.b16 %v1702
    %v1717 = vunpack.c.l.b16 %v1703
    %v1718 = vunpack.c.l.b16 %v1704
    %v1719 = vunpack.c.l.b16 %v1705
    %v1720 = vpack.c.b16 %v1717, %v1716
    %v1721 = vpack.c.b16 %v1719, %v1718
    %v1725 = vsel %vm169, %v1706, 0
    %1727 = vmatprep.subr.bf16.mxu0 0
    %1728 = vmatpush1.bf16.msra.mxu0 %v1720
    %1729 = vmatprep.subr.bf16.mxu0 0
    %1730 = vmatpush1.bf16.msra.mxu0 %v1721
    %1731 = vmatprep.subr.bf16.mxu0 0
    %1732 = vmatpush1.bf16.msra.mxu0 0
    %1733 = vmatprep.subr.bf16.mxu0 0
    %1734 = vmatpush1.bf16.msra.mxu0 0
    %1735 = vmatprep.subr.bf16.mxu0 0
    %1736 = vmatpush1.bf16.msra.mxu0 0
    %1737 = vmatprep.subr.bf16.mxu0 0
    %1738 = vmatpush1.bf16.msra.mxu0 0
    %1739 = vmatprep.subr.bf16.mxu0 0
    %1740 = vmatpush1.bf16.msra.mxu0 0
    %1741 = vmatprep.subr.bf16.mxu0 0
    %1742 = vmatpush1.bf16.msra.mxu0 0
    %1743 = vmatprep.subr.bf16.mxu0 0
    %1744 = vmatpush1.bf16.msra.mxu0 0
    %1745 = vmatprep.subr.bf16.mxu0 0
    %1746 = vmatpush1.bf16.msra.mxu0 0
    %1747 = vmatprep.subr.bf16.mxu0 0
    %1748 = vmatpush1.bf16.msra.mxu0 0
    %1749 = vmatprep.subr.bf16.mxu0 0
    %1750 = vmatpush1.bf16.msra.mxu0 0
    %1751 = vmatprep.subr.bf16.mxu0 0
    %1752 = vmatpush1.bf16.msra.mxu0 0
    %1753 = vmatprep.subr.bf16.mxu0 0
    %1754 = vmatpush1.bf16.msra.mxu0 0
    %1755 = vmatprep.subr.bf16.mxu0 0
    %1756 = vmatpush1.bf16.msra.mxu0 0
    %1757 = vmatprep.subr.bf16.mxu0 0
    %1758 = vmatpush1.bf16.msra.mxu0 0
    %1759 = vmatprep.mubr.bf16.mxu0 0
    %1760 = vmatmul.mubr.bf16.gmra.mrb[0].mxu0 %v1725
    %v1761 = vpop.f32.mrb[0].mxu0
    %v1762 = vadd.f32 %v1711, %v1761
    %v1763 = vpop.f32.mrb[0].mxu0
    %v1764 = vpop.f32.mrb[0].mxu0
    %v1765 = vadd.f32 %v1711, %v1764
    %v1766 = vpop.f32.mrb[0].mxu0
    %1767 = vdwg.mxu0
    %v1768 = vmul.f32 %v1762, %v1762
    %v1769 = vmul.f32 %v1765, %v1765
    %v1770 = vmul.f32 %v1762, %v1768
    %v1771 = vmul.f32 %v1765, %v1769
    %v1772 = vmul.f32 %v1770, 0.044715
    %v1773 = vmul.f32 %v1771, 0.044715
    %v1774 = vadd.f32 %v1762, %v1772
    %v1775 = vadd.f32 %v1765, %v1773
    %v1776 = vmul.f32 %v1774, 0.7978846
    %v1777 = vmul.f32 %v1775, 0.7978846
    %v1778 = vtanh.pop %v1776
    %v1779 = vtanh.pop %v1777
    %v1780 = vadd.f32 %v1778, 1.0
    %v1781 = vadd.f32 %v1779, 1.0
    %v1782 = vmul.f32 %v1780, 0.5
    %v1783 = vmul.f32 %v1781, 0.5
    %v1784 = vmul.f32 %v1762, %v1782
    %v1785 = vmul.f32 %v1765, %v1783
    %v1786 = vld [vmem:[#allocation2 + $0x80] sm:$0xf]
    %v1787 = vld [vmem:[#allocation2 + $0x84] sm:$0xf]
    %v1788 = vld [vmem:[#allocation2 + $0x88] sm:$0xf]
    %v1789 = vld [vmem:[#allocation2 + $0x8c] sm:$0xf]
    %v1790 = vld [vmem:[#allocation2 + $0x90] sm:$0xf]
    %v1791 = vld [vmem:[#allocation2 + $0x94] sm:$0xf]
    %v1792 = vld [vmem:[#allocation2 + $0x98] sm:$0xf]
    %v1793 = vld [vmem:[#allocation2 + $0x9c] sm:$0xf]
    %v1794 = vpack.c.bf16 %v1785, %v1784
    %v1795 = vld [vmem:[%s3 + $0xf] sm:$0x1]
    %v1796 = vlaneseq
    %v1797 = vshrl.u32 %v1796, 7
    %v1798 = vsub.s32 0, %v1797
    %v1799 = vrot.slane %v1795, %v1798
    %v1808 = vunpack.c.l.b16 %v1786
    %v1809 = vunpack.c.l.b16 %v1787
    %v1810 = vunpack.c.l.b16 %v1788
    %v1811 = vunpack.c.l.b16 %v1789
    %v1812 = vunpack.c.l.b16 %v1790
    %v1813 = vunpack.c.l.b16 %v1791
    %v1814 = vunpack.c.l.b16 %v1792
    %v1815 = vunpack.c.l.b16 %v1793
    %v1816 = vpack.c.b16 %v1809, %v1808
    %v1817 = vpack.c.b16 %v1811, %v1810
    %v1818 = vpack.c.b16 %v1813, %v1812
    %v1819 = vpack.c.b16 %v1815, %v1814
    %v1825 = vsel %vm988, %v1794, 0
    %1827 = vmatprep.subr.bf16.mxu0 0
    %1828 = vmatpush1.bf16.msra.mxu0 %v1816
    %1829 = vmatprep.subr.bf16.mxu0 0
    %1830 = vmatpush1.bf16.msra.mxu0 %v1817
    %1831 = vmatprep.subr.bf16.mxu0 0
    %1832 = vmatpush1.bf16.msra.mxu0 %v1818
    %1833 = vmatprep.subr.bf16.mxu0 0
    %1834 = vmatpush1.bf16.msra.mxu0 %v1819
    %1835 = vmatprep.subr.bf16.mxu0 0
    %1836 = vmatpush1.bf16.msra.mxu0 0
    %1837 = vmatprep.subr.bf16.mxu0 0
    %1838 = vmatpush1.bf16.msra.mxu0 0
    %1839 = vmatprep.subr.bf16.mxu0 0
    %1840 = vmatpush1.bf16.msra.mxu0 0
    %1841 = vmatprep.subr.bf16.mxu0 0
    %1842 = vmatpush1.bf16.msra.mxu0 0
    %1843 = vmatprep.subr.bf16.mxu0 0
    %1844 = vmatpush1.bf16.msra.mxu0 0
    %1845 = vmatprep.subr.bf16.mxu0 0
    %1846 = vmatpush1.bf16.msra.mxu0 0
    %1847 = vmatprep.subr.bf16.mxu0 0
    %1848 = vmatpush1.bf16.msra.mxu0 0
    %1849 = vmatprep.subr.bf16.mxu0 0
    %1850 = vmatpush1.bf16.msra.mxu0 0
    %1851 = vmatprep.subr.bf16.mxu0 0
    %1852 = vmatpush1.bf16.msra.mxu0 0
    %1853 = vmatprep.subr.bf16.mxu0 0
    %1854 = vmatpush1.bf16.msra.mxu0 0
    %1855 = vmatprep.subr.bf16.mxu0 0
    %1856 = vmatpush1.bf16.msra.mxu0 0
    %1857 = vmatprep.subr.bf16.mxu0 0
    %1858 = vmatpush1.bf16.msra.mxu0 0
    %1859 = vmatprep.mubr.bf16.mxu0 0
    %1860 = vmatmul.mubr.bf16.gmra.mrb[0].mxu0 %v1825
    %v1861 = vpop.f32.mrb[0].mxu0
    %v1862 = vadd.f32 %v1799, %v1861
    %v1863 = vpop.f32.mrb[0].mxu0
    %v1864 = vpop.f32.mrb[0].mxu0
    %v1865 = vadd.f32 %v1799, %v1864
    %v1866 = vpop.f32.mrb[0].mxu0
    %1867 = vdwg.mxu0
    %v1868 = vadd.f32 %v1700, %v1862
    %v1869 = vadd.f32 %v1701, %v1865
    %v1870 = vld [vmem:[%s3 + $0x10] sm:$0x1]
    %v1871 = vld [vmem:[%s3 + $0x11] sm:$0x1]
    %v1872 = vsel %vm169, %v1868, 0.0
    %1873 = vadd.xlane.f32.xlu0 %v1872
    %v1874 = vpop.xlane.xlu0 %1873
    %v1875 = vsel %vm169, %v1869, 0.0
    %1876 = vadd.xlane.f32.xlu0 %v1875
    %v1877 = vpop.xlane.xlu0 %1876
    %v1878 = vmul.f32 %v1874, %v176
    %v1879 = vmul.f32 %v1877, %v176
    %v1880 = vsub.f32 %v1868, %v1878
    %v1881 = vsub.f32 %v1869, %v1879
    %v1882 = vmul.f32 %v1880, %v1880
    %v1883 = vmul.f32 %v1881, %v1881
    %v1884 = vsel %vm169, %v1882, 0.0
    %1885 = vadd.xlane.f32.xlu0 %v1884
    %v1886 = vpop.xlane.xlu0 %1885
    %v1887 = vsel %vm169, %v1883, 0.0
    %1888 = vadd.xlane.f32.xlu0 %v1887
    %v1889 = vpop.xlane.xlu0 %1888
    %v1890 = vmul.f32 %v1886, %v176
    %v1891 = vmul.f32 %v1889, %v176
    %v1892 = vadd.f32 %v1890, 1e-12
    %v1893 = vadd.f32 %v1891, 1e-12
    %v1894 = vrsqrt.pop %v1892
    %v1895 = vrsqrt.pop %v1893
    %v1896 = vmul.f32 %v1880, %v1894
    %v1897 = vmul.f32 %v1881, %v1895
    %v1898 = vlaneseq
    %v1899 = vshrl.u32 %v1898, 7
    %v1900 = vsub.s32 0, %v1899
    %v1901 = vrot.slane %v1870, %v1900
    %v1902 = vmul.f32 %v1896, %v1901
    %v1903 = vmul.f32 %v1897, %v1901
    %v1904 = vlaneseq
    %v1905 = vshrl.u32 %v1904, 7
    %v1906 = vsub.s32 0, %v1905
    %v1907 = vrot.slane %v1871, %v1906
    %v1908 = vadd.f32 %v1902, %v1907
    %v1909 = vadd.f32 %v1903, %v1907
    %v1910 = vld [vmem:[#allocation2 + $0xa0] sm:$0xf]
    %v1911 = vld [vmem:[#allocation2 + $0xa4] sm:$0xf]
    %v1912 = vld [vmem:[#allocation2 + $0xa8] sm:$0xf]
    %v1913 = vld [vmem:[#allocation2 + $0xac] sm:$0xf]
    %v1914 = vpack.c.bf16 %v1909, %v1908
    %v1915 = vld [vmem:[%s3 + $0x12] sm:$0x1]
    %v1916 = vlaneseq
    %v1917 = vshrl.u32 %v1916, 7
    %v1918 = vsub.s32 0, %v1917
    %v1919 = vrot.slane %v1915, %v1918
    %v1924 = vunpack.c.l.b16 %v1910
    %v1925 = vunpack.c.l.b16 %v1911
    %v1926 = vunpack.c.l.b16 %v1912
    %v1927 = vunpack.c.l.b16 %v1913
    %v1928 = vpack.c.b16 %v1925, %v1924
    %v1929 = vpack.c.b16 %v1927, %v1926
    %v1933 = vsel %vm169, %v1914, 0
    %1935 = vmatprep.subr.bf16.mxu0 0
    %1936 = vmatpush1.bf16.msra.mxu0 %v1928
    %1937 = vmatprep.subr.bf16.mxu0 0
    %1938 = vmatpush1.bf16.msra.mxu0 %v1929
    %1939 = vmatprep.subr.bf16.mxu0 0
    %1940 = vmatpush1.bf16.msra.mxu0 0
    %1941 = vmatprep.subr.bf16.mxu0 0
    %1942 = vmatpush1.bf16.msra.mxu0 0
    %1943 = vmatprep.subr.bf16.mxu0 0
    %1944 = vmatpush1.bf16.msra.mxu0 0
    %1945 = vmatprep.subr.bf16.mxu0 0
    %1946 = vmatpush1.bf16.msra.mxu0 0
    %1947 = vmatprep.subr.bf16.mxu0 0
    %1948 = vmatpush1.bf16.msra.mxu0 0
    %1949 = vmatprep.subr.bf16.mxu0 0
    %1950 = vmatpush1.bf16.msra.mxu0 0
    %1951 = vmatprep.subr.bf16.mxu0 0
    %1952 = vmatpush1.bf16.msra.mxu0 0
    %1953 = vmatprep.subr.bf16.mxu0 0
    %1954 = vmatpush1.bf16.msra.mxu0 0
    %1955 = vmatprep.subr.bf16.mxu0 0
    %1956 = vmatpush1.bf16.msra.mxu0 0
    %1957 = vmatprep.subr.bf16.mxu0 0
    %1958 = vmatpush1.bf16.msra.mxu0 0
    %1959 = vmatprep.subr.bf16.mxu0 0
    %1960 = vmatpush1.bf16.msra.mxu0 0
    %1961 = vmatprep.subr.bf16.mxu0 0
    %1962 = vmatpush1.bf16.msra.mxu0 0
    %1963 = vmatprep.subr.bf16.mxu0 0
    %1964 = vmatpush1.bf16.msra.mxu0 0
    %1965 = vmatprep.subr.bf16.mxu0 0
    %1966 = vmatpush1.bf16.msra.mxu0 0
    %1967 = vmatprep.mubr.bf16.mxu0 0
    %1968 = vmatmul.mubr.bf16.gmra.mrb[0].mxu0 %v1933
    %v1969 = vpop.f32.mrb[0].mxu0
    %v1970 = vadd.f32 %v1919, %v1969
    %v1971 = vpop.f32.mrb[0].mxu0
    %v1972 = vpop.f32.mrb[0].mxu0
    %v1973 = vadd.f32 %v1919, %v1972
    %v1974 = vpop.f32.mrb[0].mxu0
    %1975 = vdwg.mxu0
    %v1976 = vtanh.pop %v1970
    %v1977 = vtanh.pop %v1973
    %v1978 = vld [vmem:[#allocation2 + $0xb0] sm:$0xf]
    %v1979 = vld [vmem:[#allocation2 + $0xb4] sm:$0xf]
    %v1980 = vld [vmem:[#allocation2 + $0xb8] sm:$0xf]
    %v1981 = vld [vmem:[#allocation2 + $0xbc] sm:$0xf]
    %v1982 = vpack.c.bf16 %v1977, %v1976
    %v1987 = vunpack.c.l.b16 %v1978
    %v1988 = vunpack.c.l.b16 %v1979
    %v1989 = vunpack.c.l.b16 %v1980
    %v1990 = vunpack.c.l.b16 %v1981
    %v1991 = vpack.c.b16 %v1988, %v1987
    %v1992 = vpack.c.b16 %v1990, %v1989
    %v1996 = vsel %vm169, %v1982, 0
    %1998 = vmatprep.subr.bf16.mxu0 0
    %1999 = vmatpush1.bf16.msra.mxu0 %v1991
    %2000 = vmatprep.subr.bf16.mxu0 0
    %2001 = vmatpush1.bf16.msra.mxu0 %v1992
    %2002 = vmatprep.subr.bf16.mxu0 0
    %2003 = vmatpush1.bf16.msra.mxu0 0
    %2004 = vmatprep.subr.bf16.mxu0 0
    %2005 = vmatpush1.bf16.msra.mxu0 0
    %2006 = vmatprep.subr.bf16.mxu0 0
    %2007 = vmatpush1.bf16.msra.mxu0 0
    %2008 = vmatprep.subr.bf16.mxu0 0
    %2009 = vmatpush1.bf16.msra.mxu0 0
    %2010 = vmatprep.subr.bf16.mxu0 0
    %2011 = vmatpush1.bf16.msra.mxu0 0
    %2012 = vmatprep.subr.bf16.mxu0 0
    %2013 = vmatpush1.bf16.msra.mxu0 0
    %2014 = vmatprep.subr.bf16.mxu0 0
    %2015 = vmatpush1.bf16.msra.mxu0 0
    %2016 = vmatprep.subr.bf16.mxu0 0
    %2017 = vmatpush1.bf16.msra.mxu0 0
    %2018 = vmatprep.subr.bf16.mxu0 0
    %2019 = vmatpush1.bf16.msra.mxu0 0
    %2020 = vmatprep.subr.bf16.mxu0 0
    %2021 = vmatpush1.bf16.msra.mxu0 0
    %2022 = vmatprep.subr.bf16.mxu0 0
    %2023 = vmatpush1.bf16.msra.mxu0 0
    %2024 = vmatprep.subr.bf16.mxu0 0
    %2025 = vmatpush1.bf16.msra.mxu0 0
    %2026 = vmatprep.subr.bf16.mxu0 0
    %2027 = vmatpush1.bf16.msra.mxu0 0
    %2028 = vmatprep.subr.bf16.mxu0 0
    %2029 = vmatpush1.bf16.msra.mxu0 0
    %2030 = vmatprep.mubr.bf16.mxu0 0
    %2031 = vmatmul.mubr.bf16.gmra.mrb[0].mxu0 %v1996
    %v2032 = vpop.f32.mrb[0].mxu0
    %v2033 = vadd.f32 0.0, %v2032
    %v2034 = vpop.f32.mrb[0].mxu0
    %v2035 = vpop.f32.mrb[0].mxu0
    %v2036 = vadd.f32 0.0, %v2035
    %v2037 = vpop.f32.mrb[0].mxu0
    %2038 = vdwg.mxu0
    %2039 = vst.msk [vmem:[%s4] sm:$0xff] %vm169, %v1908
    %2040 = vst.msk [vmem:[%s4 + $0x8] sm:$0xff] %vm169, %v1909
    %2041 = vst.msk [vmem:[%s4 + $0x10] sm:$0xff] %vm169, %v1976
    %2042 = vst.msk [vmem:[%s4 + $0x18] sm:$0xff] %vm169, %v1977
    %2043 = vst [vmem:[%s4 + $0x20] sm:$0xff] %v2033
    %2044 = vst [vmem:[%s4 + $0x28] sm:$0xff] %v2036
    // Predicated region
    $region22: #{good_bad_bert_forward.1} parent=1 // pred_check
      _
    $region23: #{good_bad_bert_forward.1} parent=1 // pred_check_branch
      %2046 = sbr.rel (0) target = $region25
    $region24: #{good_bad_bert_forward.1} parent=1 // pred_region
      _
    $region25: #{good_bad_bert_forward.1} parent=1 // pred_fallthru
      _
    // Predicated region
    $region26: #{good_bad_bert_forward.1} parent=1 // pred_check
      _
    $region27: #{good_bad_bert_forward.1} parent=1 // pred_check_branch
      %2048 = sbr.rel (0) target = $region29
    $region28: #{good_bad_bert_forward.1} parent=1 // pred_region
      _
    $region29: #{good_bad_bert_forward.1} parent=1 // pred_fallthru
      _
    %2049 = vsyncpa [#allocation3], 1

</llo_original>
